<compile_context>
chip_gen: v7x
topology: tpu7x:2x2x1
jax: 0.10.0
libtpu: 0.0.40
codegen_flags: <defaults>
</compile_context>

<pallas_src>
import math
import functools

import jax
import jax.numpy as jnp
from jax import lax
from jax.experimental import pallas as pl
from jax.experimental.pallas import tpu as pltpu

# ----------------------------- Config (small, GQA) -----------------------------
N_EMBD = 32
N_HEAD = 4
N_QUERY_GROUPS = 2            # grouped-query attention: q_per_kv = 2
HEAD_SIZE = 8
ROTARY_PERCENTAGE = 1.0
ROPE_N_ELEM = int(HEAD_SIZE * ROTARY_PERCENTAGE)
Q_PER_KV = N_HEAD // N_QUERY_GROUPS
QKV_SHAPE = (N_HEAD + 2 * N_QUERY_GROUPS) * HEAD_SIZE   # 64
# config.attention_scores_scalar = None, attention_logit_softcapping = None,
# sliding_window_size = None, bias = True

B = 2
T = 8


# ------------------------- Fused forward kernel (single step) -------------------------
def fused_csa_kernel(x_ref, w_ref, b_ref, wr_ref, br_ref, cos_ref, sin_ref,
                     bias_ref, wp_ref, bp_ref, o_ref, *,
                     n_groups, q_per_kv, head_size):
    f32 = jnp.float32
    dn = (((1,), (1,)), ((), ()))                 # contract on in-dim: x @ W^T

    x = x_ref[...].astype(f32)                    # (B*T, C) slab (B folded)

    # QKV projection.  W rows pre-permuted to [Q heads | K groups | V groups];
    # Q rows pre-scaled by 1/sqrt(head_size) (scale folded into weights).
    qkv = lax.dot_general(x, w_ref[...], dn, preferred_element_type=f32) + b_ref[...]
    # Rotate-half source via partner-permuted / sign-baked weights (no XLU shuffles).
    rot = lax.dot_general(x, wr_ref[...], dn, preferred_element_type=f32) + br_ref[...]
    # Single lane-dense RoPE pass over the whole slab (V lanes: cos=1, sin=0).
    qkv = qkv * cos_ref[...] + rot * sin_ref[...]

    bias = bias_ref[...]                          # additive block-diag causal mask
    n_head = n_groups * q_per_kv
    kb = n_head * head_size                       # K region start lane
    vb = kb + n_groups * head_size                # V region start lane

    head_outs = []
    for g in range(n_groups):                     # static (unrolled)
        k = qkv[:, kb + g * head_size: kb + (g + 1) * head_size]
        v = qkv[:, vb + g * head_size: vb + (g + 1) * head_size]
        for h in range(q_per_kv):                 # GQA: reuse this group's K/V
            hh = g * q_per_kv + h
            q = qkv[:, hh * head_size:(hh + 1) * head_size]
            # scores (pre-scaled q) + precomputed additive causal/batch mask
            s = lax.dot_general(q, k, dn, preferred_element_type=f32) + bias
            m = jnp.max(s, axis=-1, keepdims=True)
            p = jnp.exp(s - m)
            d = jnp.sum(p, axis=-1, keepdims=True)
            r = pl.reciprocal(d, approx=True)     # EUP slot
            r = r * (2.0 - d * r)                 # one Newton step -> ~f32 accuracy
            # fold normalization after PV: scale the (B*T, hs) tile, not (B*T, B*T)
            head_outs.append(jnp.dot(p, v, preferred_element_type=f32) * r)

    y = jnp.concatenate(head_outs, axis=-1)       # (B*T, n_head*hs), torch head order
    out = lax.dot_general(y, wp_ref[...], dn, preferred_element_type=f32) + bp_ref[...]
    o_ref[...] = out.astype(o_ref.dtype)          # one coalesced (B*T, C) store


# ----------------------------- Wrapper-side parameter prep -----------------------------
def _prepare_qkv_weights(params):
    hs = HEAD_SIZE
    group_stride = (Q_PER_KV + 2) * hs
    # Row permutation: Q heads (torch head order g0h0, g0h1, g1h0, g1h1), then K, then V.
    perm = []
    for g in range(N_QUERY_GROUPS):
        for h in range(Q_PER_KV):
            s0 = g * group_stride + h * hs
            perm.extend(range(s0, s0 + hs))
    for g in range(N_QUERY_GROUPS):
        s0 = g * group_stride + Q_PER_KV * hs
        perm.extend(range(s0, s0 + hs))
    for g in range(N_QUERY_GROUPS):
        s0 = g * group_stride + (Q_PER_KV + 1) * hs
        perm.extend(range(s0, s0 + hs))
    perm = jnp.asarray(perm, dtype=jnp.int32)

    w = params["w_attn"][perm, :].astype(jnp.float32)      # (QKV, C), new layout
    b = params["b_attn"][perm].astype(jnp.float32)

    # Fold 1/sqrt(head_size) into the Q rows (RoPE is linear, so it commutes).
    nq = N_HEAD * hs
    scale = 1.0 / math.sqrt(HEAD_SIZE)      # attention_scores_scalar is None
    w = w.at[:nq].multiply(scale)
    b = b.at[:nq].multiply(scale)

    # Rotate-half partner weights: row j -> +/- row of lane j's in-head partner.
    lanes = jnp.arange(QKV_SHAPE)
    head, pos = lanes // hs, lanes % hs
    half = ROPE_N_ELEM // 2
    partner = head * hs + (pos + half) % ROPE_N_ELEM
    sign = jnp.where(pos < half, -1.0, 1.0).astype(jnp.float32)
    roped = (lanes < (N_HEAD + N_QUERY_GROUPS) * hs) & (pos < ROPE_N_ELEM)
    w_rot = jnp.where(roped[:, None], sign[:, None] * w[partner, :], 0.0)
    b_rot = jnp.where(roped, sign * b[partner], 0.0)
    return w, b, w_rot, b_rot


def _build_rope_tables(cos, sin, Bx):
    """Full-width (B*T, QKV_SHAPE) cos/sin tables (identity on non-roped / V lanes)."""
    Tx = cos.shape[0]
    n_rope_heads = N_HEAD + N_QUERY_GROUPS
    pad = HEAD_SIZE - ROPE_N_ELEM
    cos_h = jnp.concatenate([cos, jnp.ones((Tx, pad), cos.dtype)], axis=1) if pad else cos
    sin_h = jnp.concatenate([sin, jnp.zeros((Tx, pad), sin.dtype)], axis=1) if pad else sin
    nv = QKV_SHAPE - n_rope_heads * HEAD_SIZE
    cosw = jnp.concatenate([jnp.tile(cos_h, (1, n_rope_heads)),
                            jnp.ones((Tx, nv), cos.dtype)], axis=1)
    sinw = jnp.concatenate([jnp.tile(sin_h, (1, n_rope_heads)),
                            jnp.zeros((Tx, nv), sin.dtype)], axis=1)
    return (jnp.tile(cosw, (Bx, 1)).astype(jnp.float32),
            jnp.tile(sinw, (Bx, 1)).astype(jnp.float32))


def _build_attn_bias(Bx, Tx):
    """Additive (B*T, B*T) mask: 0 where same batch & causal, else -1e30."""
    idx = jnp.arange(Bx * Tx)
    same_batch = (idx[:, None] // Tx) == (idx[None, :] // Tx)
    causal = idx[None, :] <= idx[:, None]
    return jnp.where(same_batch & causal, 0.0, -1e30).astype(jnp.float32)


# ----------------------------- Wrapper -----------------------------
def causal_self_attention_forward(x, cos, sin, params):
    Bx, Tx, C = x.shape
    BT = Bx * Tx

    w_qkv, b_qkv, w_rot, b_rot = _prepare_qkv_weights(params)
    cos_bt, sin_bt = _build_rope_tables(cos, sin, Bx)
    bias = _build_attn_bias(Bx, Tx)
    b_proj2 = params["b_proj"].reshape(1, N_EMBD).astype(jnp.float32)

    kernel = functools.partial(
        fused_csa_kernel, n_groups=N_QUERY_GROUPS, q_per_kv=Q_PER_KV,
        head_size=HEAD_SIZE)

    out = pl.pallas_call(
        kernel,
        out_shape=jax.ShapeDtypeStruct((BT, N_EMBD), x.dtype),
        grid=(1,),                                   # B folded: one step (v5e/v6e)
        in_specs=[
            pl.BlockSpec((BT, C), lambda i: (0, 0)),                    # x (B*T, C)
            pl.BlockSpec((QKV_SHAPE, C), lambda i: (0, 0)),             # W_qkv (permuted)
            pl.BlockSpec((1, QKV_SHAPE), lambda i: (0, 0)),             # b_qkv
            pl.BlockSpec((QKV_SHAPE, C), lambda i: (0, 0)),             # W_rot (rotate-half)
            pl.BlockSpec((1, QKV_SHAPE), lambda i: (0, 0)),             # b_rot
            pl.BlockSpec((BT, QKV_SHAPE), lambda i: (0, 0)),            # cos (full width)
            pl.BlockSpec((BT, QKV_SHAPE), lambda i: (0, 0)),            # sin (full width)
            pl.BlockSpec((BT, BT), lambda i: (0, 0)),                   # additive mask
            pl.BlockSpec((N_EMBD, N_HEAD * HEAD_SIZE), lambda i: (0, 0)),  # W_proj
            pl.BlockSpec((1, N_EMBD), lambda i: (0, 0)),                # b_proj
        ],
        out_specs=pl.BlockSpec((BT, N_EMBD), lambda i: (0, 0)),
        compiler_params=pltpu.CompilerParams(
            dimension_semantics=("arbitrary",)),
    )(x.reshape(BT, C), w_qkv, b_qkv.reshape(1, -1), w_rot, b_rot.reshape(1, -1),
      cos_bt, sin_bt, bias, params["w_proj"], b_proj2)

    return out.reshape(Bx, Tx, N_EMBD)


# ----------------------------- Pure-JAX reference -----------------------------
def reference_forward(x, cos, sin, params):
    Bx, Tx, C = x.shape
    qkv = x.reshape(Bx * Tx, C) @ params["w_attn"].T + params["b_attn"]
    qkv = qkv.reshape(Bx, Tx, N_QUERY_GROUPS, Q_PER_KV + 2, HEAD_SIZE)
    qkv = jnp.transpose(qkv, (0, 2, 3, 1, 4))
    q = qkv[:, :, :Q_PER_KV]
    k = jnp.broadcast_to(qkv[:, :, Q_PER_KV:Q_PER_KV + 1],
                         (Bx, N_QUERY_GROUPS, Q_PER_KV, Tx, HEAD_SIZE))
    v = jnp.broadcast_to(qkv[:, :, Q_PER_KV + 1:],
                         (Bx, N_QUERY_GROUPS, Q_PER_KV, Tx, HEAD_SIZE))
    q = q.reshape(Bx, -1, Tx, HEAD_SIZE)
    k = k.reshape(Bx, -1, Tx, HEAD_SIZE)
    v = v.reshape(Bx, -1, Tx, HEAD_SIZE)

    def rope(t):
        half = ROPE_N_ELEM // 2
        x1, x2 = t[..., :half], t[..., half:ROPE_N_ELEM]
        rot = jnp.concatenate([-x2, x1], axis=-1)
        roped = t[..., :ROPE_N_ELEM] * cos + rot * sin
        return jnp.concatenate([roped, t[..., ROPE_N_ELEM:]], axis=-1)

    q, k = rope(q), rope(k)
    scale = 1.0 / math.sqrt(HEAD_SIZE)
    s = jnp.einsum("bhqd,bhkd->bhqk", q, k) * scale
    mask = jnp.tril(jnp.ones((Tx, Tx), dtype=bool))
    s = jnp.where(mask, s, jnp.finfo(jnp.float32).min)
    p = jax.nn.softmax(s.astype(jnp.float32), axis=-1)
    y = jnp.einsum("bhqk,bhkd->bhqd", p, v)
    y = jnp.transpose(y, (0, 2, 1, 3)).reshape(Bx, Tx, N_HEAD * HEAD_SIZE)
    out = y.reshape(Bx * Tx, -1) @ params["w_proj"].T + params["b_proj"]
    return out.reshape(Bx, Tx, N_EMBD)


def build_rope_cache(seq_len, n_elem, base=10000.0):
    theta = 1.0 / (base ** (jnp.arange(0, n_elem, 2, dtype=jnp.float32) / n_elem))
    pos = jnp.arange(seq_len, dtype=jnp.float32)
    idx_theta = jnp.outer(pos, theta)                   # (T, n_elem//2)
    idx_theta = jnp.concatenate([idx_theta, idx_theta], axis=-1)
    return jnp.cos(idx_theta), jnp.sin(idx_theta)


if __name__ == "__main__":
    key = jax.random.PRNGKey(0)
    k1, k2, k3, k4, k5 = jax.random.split(key, 5)
    params = {
        "w_attn": jax.random.normal(k1, (QKV_SHAPE, N_EMBD), jnp.float32) * 0.02,
        "b_attn": jax.random.normal(k2, (QKV_SHAPE,), jnp.float32) * 0.02,
        "w_proj": jax.random.normal(k3, (N_EMBD, N_HEAD * HEAD_SIZE), jnp.float32) * 0.02,
        "b_proj": jax.random.normal(k4, (N_EMBD,), jnp.float32) * 0.02,
    }
    x = jax.random.normal(k5, (B, T, N_EMBD), jnp.float32)
    cos, sin = build_rope_cache(T, ROPE_N_ELEM)

    out = causal_self_attention_forward(x, cos, sin, params)
    out = jax.block_until_ready(out)

    ref = reference_forward(x, cos, sin, params)
    assert out.shape == (B, T, N_EMBD)
    assert jnp.allclose(out, ref, atol=1e-4, rtol=1e-4), "mismatch vs reference"
    print("KERNEL_OK")
</pallas_src>

<mosaic_0001>
module attributes {stable_mosaic.version = 11 : i64} {
  func.func @fused_csa_kernel(%arg0: i32, %arg1: memref<16x32xf32, #tpu.memory_space<vmem>>, %arg2: memref<64x32xf32, #tpu.memory_space<vmem>>, %arg3: memref<1x64xf32, #tpu.memory_space<vmem>>, %arg4: memref<64x32xf32, #tpu.memory_space<vmem>>, %arg5: memref<1x64xf32, #tpu.memory_space<vmem>>, %arg6: memref<16x64xf32, #tpu.memory_space<vmem>>, %arg7: memref<16x64xf32, #tpu.memory_space<vmem>>, %arg8: memref<16x16xf32, #tpu.memory_space<vmem>>, %arg9: memref<32x32xf32, #tpu.memory_space<vmem>>, %arg10: memref<1x32xf32, #tpu.memory_space<vmem>>, %arg11: memref<16x32xf32, #tpu.memory_space<vmem>>) attributes {dimension_semantics = [#tpu.dimension_semantics<arbitrary>], iteration_bounds = array<i64: 1>, scalar_prefetch = 0 : i64, scratch_operands = 0 : i64, tpu.core_type = #tpu.core_type<tc>, window_params = [{pipeline_mode = #tpu.pipeline_mode<synchronous>, transform_indices = @transform_0, window_bounds = array<i64: 16, 32>}, {pipeline_mode = #tpu.pipeline_mode<synchronous>, transform_indices = @transform_1, window_bounds = array<i64: 64, 32>}, {pipeline_mode = #tpu.pipeline_mode<synchronous>, transform_indices = @transform_2, window_bounds = array<i64: 1, 64>}, {pipeline_mode = #tpu.pipeline_mode<synchronous>, transform_indices = @transform_3, window_bounds = array<i64: 64, 32>}, {pipeline_mode = #tpu.pipeline_mode<synchronous>, transform_indices = @transform_4, window_bounds = array<i64: 1, 64>}, {pipeline_mode = #tpu.pipeline_mode<synchronous>, transform_indices = @transform_5, window_bounds = array<i64: 16, 64>}, {pipeline_mode = #tpu.pipeline_mode<synchronous>, transform_indices = @transform_6, window_bounds = array<i64: 16, 64>}, {pipeline_mode = #tpu.pipeline_mode<synchronous>, transform_indices = @transform_7, window_bounds = array<i64: 16, 16>}, {pipeline_mode = #tpu.pipeline_mode<synchronous>, transform_indices = @transform_8, window_bounds = array<i64: 32, 32>}, {pipeline_mode = #tpu.pipeline_mode<synchronous>, transform_indices = @transform_9, window_bounds = array<i64: 1, 32>}, {pipeline_mode = #tpu.pipeline_mode<synchronous>, transform_indices = @transform_10, window_bounds = array<i64: 16, 32>}]} {
    %c0 = arith.constant 0 : index
    %c0_0 = arith.constant 0 : index
    %0 = vector.load %arg1[%c0, %c0_0] : memref<16x32xf32, #tpu.memory_space<vmem>>, vector<16x32xf32>
    %c0_1 = arith.constant 0 : index
    %c0_2 = arith.constant 0 : index
    %1 = vector.load %arg2[%c0_1, %c0_2] : memref<64x32xf32, #tpu.memory_space<vmem>>, vector<64x32xf32>
    %cst = arith.constant dense<0.000000e+00> : vector<16x64xf32>
    %2 = tpu.matmul %0, %1, %cst {dimension_numbers = #tpu.dot_dimension_numbers<[1], [1], [0], [0], [0, 0, 1, 0], [], []>} : vector<16x32xf32>, vector<64x32xf32>, vector<16x64xf32> -> vector<16x64xf32>
    %c0_3 = arith.constant 0 : index
    %c0_4 = arith.constant 0 : index
    %3 = vector.load %arg3[%c0_3, %c0_4] : memref<1x64xf32, #tpu.memory_space<vmem>>, vector<1x64xf32>
    %4 = vector.broadcast %3 : vector<1x64xf32> to vector<16x64xf32>
    %5 = arith.addf %2, %4 : vector<16x64xf32>
    %c0_5 = arith.constant 0 : index
    %c0_6 = arith.constant 0 : index
    %6 = vector.load %arg4[%c0_5, %c0_6] : memref<64x32xf32, #tpu.memory_space<vmem>>, vector<64x32xf32>
    %cst_7 = arith.constant dense<0.000000e+00> : vector<16x64xf32>
    %7 = tpu.matmul %0, %6, %cst_7 {dimension_numbers = #tpu.dot_dimension_numbers<[1], [1], [0], [0], [0, 0, 1, 0], [], []>} : vector<16x32xf32>, vector<64x32xf32>, vector<16x64xf32> -> vector<16x64xf32>
    %c0_8 = arith.constant 0 : index
    %c0_9 = arith.constant 0 : index
    %8 = vector.load %arg5[%c0_8, %c0_9] : memref<1x64xf32, #tpu.memory_space<vmem>>, vector<1x64xf32>
    %9 = vector.broadcast %8 : vector<1x64xf32> to vector<16x64xf32>
    %10 = arith.addf %7, %9 : vector<16x64xf32>
    %c0_10 = arith.constant 0 : index
    %c0_11 = arith.constant 0 : index
    %11 = vector.load %arg6[%c0_10, %c0_11] : memref<16x64xf32, #tpu.memory_space<vmem>>, vector<16x64xf32>
    %12 = arith.mulf %5, %11 : vector<16x64xf32>
    %c0_12 = arith.constant 0 : index
    %c0_13 = arith.constant 0 : index
    %13 = vector.load %arg7[%c0_12, %c0_13] : memref<16x64xf32, #tpu.memory_space<vmem>>, vector<16x64xf32>
    %14 = arith.mulf %10, %13 : vector<16x64xf32>
    %15 = arith.addf %12, %14 : vector<16x64xf32>
    %c0_14 = arith.constant 0 : index
    %c0_15 = arith.constant 0 : index
    %16 = vector.load %arg8[%c0_14, %c0_15] : memref<16x16xf32, #tpu.memory_space<vmem>>, vector<16x16xf32>
    %17 = vector.extract_strided_slice %15 {offsets = [0, 32], sizes = [16, 8], strides = [1, 1]} : vector<16x64xf32> to vector<16x8xf32>
    %18 = vector.extract_strided_slice %15 {offsets = [0, 48], sizes = [16, 8], strides = [1, 1]} : vector<16x64xf32> to vector<16x8xf32>
    %19 = vector.extract_strided_slice %15 {offsets = [0, 0], sizes = [16, 8], strides = [1, 1]} : vector<16x64xf32> to vector<16x8xf32>
    %cst_16 = arith.constant dense<0.000000e+00> : vector<16x16xf32>
    %20 = tpu.matmul %19, %17, %cst_16 {dimension_numbers = #tpu.dot_dimension_numbers<[1], [1], [0], [0], [0, 0, 1, 0], [], []>} : vector<16x8xf32>, vector<16x8xf32>, vector<16x16xf32> -> vector<16x16xf32>
    %21 = arith.addf %20, %16 : vector<16x16xf32>
    %cst_17 = arith.constant dense<0xFF800000> : vector<16xf32>
    %22 = vector.multi_reduction <maximumf>, %21, %cst_17 [1] : vector<16x16xf32> to vector<16xf32>
    %23 = vector.shape_cast %22 : vector<16xf32> to vector<16x1xf32>
    %24 = vector.broadcast %23 : vector<16x1xf32> to vector<16x16xf32>
    %25 = arith.subf %21, %24 : vector<16x16xf32>
    %26 = math.exp %25 : vector<16x16xf32>
    %cst_18 = arith.constant dense<0.000000e+00> : vector<16xf32>
    %27 = vector.multi_reduction <add>, %26, %cst_18 [1] : vector<16x16xf32> to vector<16xf32>
    %28 = vector.shape_cast %27 : vector<16xf32> to vector<16x1xf32>
    %29 = tpu.reciprocal %28 {approx = true} : vector<16x1xf32> -> vector<16x1xf32>
    %30 = arith.mulf %28, %29 : vector<16x1xf32>
    %cst_19 = arith.constant 2.000000e+00 : f32
    %31 = vector.broadcast %cst_19 : f32 to vector<16x1xf32>
    %32 = arith.subf %31, %30 : vector<16x1xf32>
    %33 = arith.mulf %29, %32 : vector<16x1xf32>
    %cst_20 = arith.constant dense<0.000000e+00> : vector<16x8xf32>
    %34 = tpu.matmul %26, %18, %cst_20 {dimension_numbers = #tpu.dot_dimension_numbers<[1], [0], [0], [1], [0, 0, 1, 1], [], []>} : vector<16x16xf32>, vector<16x8xf32>, vector<16x8xf32> -> vector<16x8xf32>
    %35 = vector.broadcast %33 : vector<16x1xf32> to vector<16x8xf32>
    %36 = arith.mulf %34, %35 : vector<16x8xf32>
    %37 = vector.extract_strided_slice %15 {offsets = [0, 8], sizes = [16, 8], strides = [1, 1]} : vector<16x64xf32> to vector<16x8xf32>
    %cst_21 = arith.constant dense<0.000000e+00> : vector<16x16xf32>
    %38 = tpu.matmul %37, %17, %cst_21 {dimension_numbers = #tpu.dot_dimension_numbers<[1], [1], [0], [0], [0, 0, 1, 0], [], []>} : vector<16x8xf32>, vector<16x8xf32>, vector<16x16xf32> -> vector<16x16xf32>
    %39 = arith.addf %38, %16 : vector<16x16xf32>
    %cst_22 = arith.constant dense<0xFF800000> : vector<16xf32>
    %40 = vector.multi_reduction <maximumf>, %39, %cst_22 [1] : vector<16x16xf32> to vector<16xf32>
    %41 = vector.shape_cast %40 : vector<16xf32> to vector<16x1xf32>
    %42 = vector.broadcast %41 : vector<16x1xf32> to vector<16x16xf32>
    %43 = arith.subf %39, %42 : vector<16x16xf32>
    %44 = math.exp %43 : vector<16x16xf32>
    %cst_23 = arith.constant dense<0.000000e+00> : vector<16xf32>
    %45 = vector.multi_reduction <add>, %44, %cst_23 [1] : vector<16x16xf32> to vector<16xf32>
    %46 = vector.shape_cast %45 : vector<16xf32> to vector<16x1xf32>
    %47 = tpu.reciprocal %46 {approx = true} : vector<16x1xf32> -> vector<16x1xf32>
    %48 = arith.mulf %46, %47 : vector<16x1xf32>
    %cst_24 = arith.constant 2.000000e+00 : f32
    %49 = vector.broadcast %cst_24 : f32 to vector<16x1xf32>
    %50 = arith.subf %49, %48 : vector<16x1xf32>
    %51 = arith.mulf %47, %50 : vector<16x1xf32>
    %cst_25 = arith.constant dense<0.000000e+00> : vector<16x8xf32>
    %52 = tpu.matmul %44, %18, %cst_25 {dimension_numbers = #tpu.dot_dimension_numbers<[1], [0], [0], [1], [0, 0, 1, 1], [], []>} : vector<16x16xf32>, vector<16x8xf32>, vector<16x8xf32> -> vector<16x8xf32>
    %53 = vector.broadcast %51 : vector<16x1xf32> to vector<16x8xf32>
    %54 = arith.mulf %52, %53 : vector<16x8xf32>
    %55 = vector.extract_strided_slice %15 {offsets = [0, 40], sizes = [16, 8], strides = [1, 1]} : vector<16x64xf32> to vector<16x8xf32>
    %56 = vector.extract_strided_slice %15 {offsets = [0, 56], sizes = [16, 8], strides = [1, 1]} : vector<16x64xf32> to vector<16x8xf32>
    %57 = vector.extract_strided_slice %15 {offsets = [0, 16], sizes = [16, 8], strides = [1, 1]} : vector<16x64xf32> to vector<16x8xf32>
    %cst_26 = arith.constant dense<0.000000e+00> : vector<16x16xf32>
    %58 = tpu.matmul %57, %55, %cst_26 {dimension_numbers = #tpu.dot_dimension_numbers<[1], [1], [0], [0], [0, 0, 1, 0], [], []>} : vector<16x8xf32>, vector<16x8xf32>, vector<16x16xf32> -> vector<16x16xf32>
    %59 = arith.addf %58, %16 : vector<16x16xf32>
    %cst_27 = arith.constant dense<0xFF800000> : vector<16xf32>
    %60 = vector.multi_reduction <maximumf>, %59, %cst_27 [1] : vector<16x16xf32> to vector<16xf32>
    %61 = vector.shape_cast %60 : vector<16xf32> to vector<16x1xf32>
    %62 = vector.broadcast %61 : vector<16x1xf32> to vector<16x16xf32>
    %63 = arith.subf %59, %62 : vector<16x16xf32>
    %64 = math.exp %63 : vector<16x16xf32>
    %cst_28 = arith.constant dense<0.000000e+00> : vector<16xf32>
    %65 = vector.multi_reduction <add>, %64, %cst_28 [1] : vector<16x16xf32> to vector<16xf32>
    %66 = vector.shape_cast %65 : vector<16xf32> to vector<16x1xf32>
    %67 = tpu.reciprocal %66 {approx = true} : vector<16x1xf32> -> vector<16x1xf32>
    %68 = arith.mulf %66, %67 : vector<16x1xf32>
    %cst_29 = arith.constant 2.000000e+00 : f32
    %69 = vector.broadcast %cst_29 : f32 to vector<16x1xf32>
    %70 = arith.subf %69, %68 : vector<16x1xf32>
    %71 = arith.mulf %67, %70 : vector<16x1xf32>
    %cst_30 = arith.constant dense<0.000000e+00> : vector<16x8xf32>
    %72 = tpu.matmul %64, %56, %cst_30 {dimension_numbers = #tpu.dot_dimension_numbers<[1], [0], [0], [1], [0, 0, 1, 1], [], []>} : vector<16x16xf32>, vector<16x8xf32>, vector<16x8xf32> -> vector<16x8xf32>
    %73 = vector.broadcast %71 : vector<16x1xf32> to vector<16x8xf32>
    %74 = arith.mulf %72, %73 : vector<16x8xf32>
    %75 = vector.extract_strided_slice %15 {offsets = [0, 24], sizes = [16, 8], strides = [1, 1]} : vector<16x64xf32> to vector<16x8xf32>
    %cst_31 = arith.constant dense<0.000000e+00> : vector<16x16xf32>
    %76 = tpu.matmul %75, %55, %cst_31 {dimension_numbers = #tpu.dot_dimension_numbers<[1], [1], [0], [0], [0, 0, 1, 0], [], []>} : vector<16x8xf32>, vector<16x8xf32>, vector<16x16xf32> -> vector<16x16xf32>
    %77 = arith.addf %76, %16 : vector<16x16xf32>
    %cst_32 = arith.constant dense<0xFF800000> : vector<16xf32>
    %78 = vector.multi_reduction <maximumf>, %77, %cst_32 [1] : vector<16x16xf32> to vector<16xf32>
    %79 = vector.shape_cast %78 : vector<16xf32> to vector<16x1xf32>
    %80 = vector.broadcast %79 : vector<16x1xf32> to vector<16x16xf32>
    %81 = arith.subf %77, %80 : vector<16x16xf32>
    %82 = math.exp %81 : vector<16x16xf32>
    %cst_33 = arith.constant dense<0.000000e+00> : vector<16xf32>
    %83 = vector.multi_reduction <add>, %82, %cst_33 [1] : vector<16x16xf32> to vector<16xf32>
    %84 = vector.shape_cast %83 : vector<16xf32> to vector<16x1xf32>
    %85 = tpu.reciprocal %84 {approx = true} : vector<16x1xf32> -> vector<16x1xf32>
    %86 = arith.mulf %84, %85 : vector<16x1xf32>
    %cst_34 = arith.constant 2.000000e+00 : f32
    %87 = vector.broadcast %cst_34 : f32 to vector<16x1xf32>
    %88 = arith.subf %87, %86 : vector<16x1xf32>
    %89 = arith.mulf %85, %88 : vector<16x1xf32>
    %cst_35 = arith.constant dense<0.000000e+00> : vector<16x8xf32>
    %90 = tpu.matmul %82, %56, %cst_35 {dimension_numbers = #tpu.dot_dimension_numbers<[1], [0], [0], [1], [0, 0, 1, 1], [], []>} : vector<16x16xf32>, vector<16x8xf32>, vector<16x8xf32> -> vector<16x8xf32>
    %91 = vector.broadcast %89 : vector<16x1xf32> to vector<16x8xf32>
    %92 = arith.mulf %90, %91 : vector<16x8xf32>
    %93 = tpu.concatenate %36, %54, %74, %92 in 1 : vector<16x8xf32>, vector<16x8xf32>, vector<16x8xf32>, vector<16x8xf32> -> vector<16x32xf32>
    %c0_36 = arith.constant 0 : index
    %c0_37 = arith.constant 0 : index
    %94 = vector.load %arg9[%c0_36, %c0_37] : memref<32x32xf32, #tpu.memory_space<vmem>>, vector<32x32xf32>
    %cst_38 = arith.constant dense<0.000000e+00> : vector<16x32xf32>
    %95 = tpu.matmul %93, %94, %cst_38 {dimension_numbers = #tpu.dot_dimension_numbers<[1], [1], [0], [0], [0, 0, 1, 0], [], []>} : vector<16x32xf32>, vector<32x32xf32>, vector<16x32xf32> -> vector<16x32xf32>
    %c0_39 = arith.constant 0 : index
    %c0_40 = arith.constant 0 : index
    %96 = vector.load %arg10[%c0_39, %c0_40] : memref<1x32xf32, #tpu.memory_space<vmem>>, vector<1x32xf32>
    %97 = vector.broadcast %96 : vector<1x32xf32> to vector<16x32xf32>
    %98 = arith.addf %95, %97 : vector<16x32xf32>
    %c0_41 = arith.constant 0 : index
    %c0_42 = arith.constant 0 : index
    %99 = vector.load %arg11[%c0_41, %c0_42] : memref<16x32xf32, #tpu.memory_space<vmem>>, vector<16x32xf32>
    tpu.vector_store %arg11[%c0_41, %c0_42], %98 {strides = array<i32>} : memref<16x32xf32, #tpu.memory_space<vmem>>, vector<16x32xf32>,
    return
  }
  func.func @transform_0(%arg0: i32) -> (i32, i32) {
    %c0_i32 = arith.constant 0 : i32
    %c0_i32_0 = arith.constant 0 : i32
    %c0_i32_1 = arith.constant 0 : i32
    return %c0_i32, %c0_i32_0 : i32, i32
  }
  func.func @transform_1(%arg0: i32) -> (i32, i32) {
    %c0_i32 = arith.constant 0 : i32
    %c0_i32_0 = arith.constant 0 : i32
    %c0_i32_1 = arith.constant 0 : i32
    return %c0_i32, %c0_i32_0 : i32, i32
  }
  func.func @transform_2(%arg0: i32) -> (i32, i32) {
    %c0_i32 = arith.constant 0 : i32
    %c0_i32_0 = arith.constant 0 : i32
    %c0_i32_1 = arith.constant 0 : i32
    return %c0_i32, %c0_i32_0 : i32, i32
  }
  func.func @transform_3(%arg0: i32) -> (i32, i32) {
    %c0_i32 = arith.constant 0 : i32
    %c0_i32_0 = arith.constant 0 : i32
    %c0_i32_1 = arith.constant 0 : i32
    return %c0_i32, %c0_i32_0 : i32, i32
  }
  func.func @transform_4(%arg0: i32) -> (i32, i32) {
    %c0_i32 = arith.constant 0 : i32
    %c0_i32_0 = arith.constant 0 : i32
    %c0_i32_1 = arith.constant 0 : i32
    return %c0_i32, %c0_i32_0 : i32, i32
  }
  func.func @transform_5(%arg0: i32) -> (i32, i32) {
    %c0_i32 = arith.constant 0 : i32
    %c0_i32_0 = arith.constant 0 : i32
    %c0_i32_1 = arith.constant 0 : i32
    return %c0_i32, %c0_i32_0 : i32, i32
  }
  func.func @transform_6(%arg0: i32) -> (i32, i32) {
    %c0_i32 = arith.constant 0 : i32
    %c0_i32_0 = arith.constant 0 : i32
    %c0_i32_1 = arith.constant 0 : i32
    return %c0_i32, %c0_i32_0 : i32, i32
  }
  func.func @transform_7(%arg0: i32) -> (i32, i32) {
    %c0_i32 = arith.constant 0 : i32
    %c0_i32_0 = arith.constant 0 : i32
    %c0_i32_1 = arith.constant 0 : i32
    return %c0_i32, %c0_i32_0 : i32, i32
  }
  func.func @transform_8(%arg0: i32) -> (i32, i32) {
    %c0_i32 = arith.constant 0 : i32
    %c0_i32_0 = arith.constant 0 : i32
    %c0_i32_1 = arith.constant 0 : i32
    return %c0_i32, %c0_i32_0 : i32, i32
  }
  func.func @transform_9(%arg0: i32) -> (i32, i32) {
    %c0_i32 = arith.constant 0 : i32
    %c0_i32_0 = arith.constant 0 : i32
    %c0_i32_1 = arith.constant 0 : i32
    return %c0_i32, %c0_i32_0 : i32, i32
  }
  func.func @transform_10(%arg0: i32) -> (i32, i32) {
    %c0_i32 = arith.constant 0 : i32
    %c0_i32_0 = arith.constant 0 : i32
    %c0_i32_1 = arith.constant 0 : i32
    return %c0_i32, %c0_i32_0 : i32, i32
  }
}

</mosaic_0001>

<llo_original>
// kernel: tpu_custom_call.1
$region0: #{tpu_custom_call.1}
  #allocation0 [shape = 'u32[]', space=smem, size = 0x4, offset = 0x4, fixed_abs, tag = 'smem constant byte address 0x4 - core index']
  #allocation1 [shape = 'u32[144,128]{1,0:T(1,128)}', space=vmem, size = 0x12000, scoped, tag = 'internal scratch']
  %s0 = inlined_call_operand.vmem [shape: f32[16,32], index: 0, kind: input, shape index: {}]
  %s1 = inlined_call_operand.vmem [shape: f32[64,32], index: 1, kind: input, shape index: {}]
  %s2 = inlined_call_operand.vmem [shape: f32[1,64], index: 2, kind: input, shape index: {}]
  %s3 = inlined_call_operand.vmem [shape: f32[64,32], index: 3, kind: input, shape index: {}]
  %s4 = inlined_call_operand.vmem [shape: f32[1,64], index: 4, kind: input, shape index: {}]
  %s5 = inlined_call_operand.vmem [shape: f32[16,64], index: 5, kind: input, shape index: {}]
  %s6 = inlined_call_operand.vmem [shape: f32[16,64], index: 6, kind: input, shape index: {}]
  %s7 = inlined_call_operand.vmem [shape: f32[16,16], index: 7, kind: input, shape index: {}]
  %s8 = inlined_call_operand.vmem [shape: f32[32,32], index: 8, kind: input, shape index: {}]
  %s9 = inlined_call_operand.vmem [shape: f32[1,32], index: 9, kind: input, shape index: {}]
  %s10 = inlined_call_operand.hbm [shape: f32[16,32], index: 10, kind: output, shape index: {}]
  %s11 = sld [smem:[#allocation0]]
  $region50: #{tpu_custom_call.1} parent=0
    _
  %s13 = ssub.s32 1, %s11
  %s14 = scalar_select 0, %s13, %s11
  $region1: #{tpu_custom_call.1} parent=0
    #allocation2 [shape = 'u8[8192]{0}', space=vmem, size = 0x2000, scoped, tag = 'output window, operand 0, single buffered']
    #allocation3 [shape = 's32[1]{0}', space=sflag, size = 0x4, scoped, tag = 'scoped memory for tpu_custom_call.1']
    %15 = vsyncpa [#allocation3], 0
    // Predicated region
    $region2: #{tpu_custom_call.1} parent=1 // pred_check
      _
    $region3: #{tpu_custom_call.1} parent=1 // pred_check_branch
      %17 = sbr.rel (0) target = $region5
    $region4: #{tpu_custom_call.1} parent=1 // pred_region
      _
    $region5: #{tpu_custom_call.1} parent=1 // pred_fallthru
      _
    // Predicated region
    $region6: #{tpu_custom_call.1} parent=1 // pred_check
      _
    $region7: #{tpu_custom_call.1} parent=1 // pred_check_branch
      %19 = sbr.rel (0) target = $region9
    $region8: #{tpu_custom_call.1} parent=1 // pred_region
      _
    $region9: #{tpu_custom_call.1} parent=1 // pred_fallthru
      _
    // Predicated region
    $region10: #{tpu_custom_call.1} parent=1 // pred_check
      _
    $region11: #{tpu_custom_call.1} parent=1 // pred_check_branch
      %21 = sbr.rel (0) target = $region13
    $region12: #{tpu_custom_call.1} parent=1 // pred_region
      _
    $region13: #{tpu_custom_call.1} parent=1 // pred_fallthru
      _
    // Predicated region
    $region14: #{tpu_custom_call.1} parent=1 // pred_check
      _
    $region15: #{tpu_custom_call.1} parent=1 // pred_check_branch
      %23 = sbr.rel (0) target = $region17
    $region16: #{tpu_custom_call.1} parent=1 // pred_region
      _
    $region17: #{tpu_custom_call.1} parent=1 // pred_fallthru
      _
    // Predicated region
    $region18: #{tpu_custom_call.1} parent=1 // pred_check
      _
    $region19: #{tpu_custom_call.1} parent=1 // pred_check_branch
      %25 = sbr.rel (0) target = $region21
    $region20: #{tpu_custom_call.1} parent=1 // pred_region
      _
    $region21: #{tpu_custom_call.1} parent=1 // pred_fallthru
      _
    // Predicated region
    $region22: #{tpu_custom_call.1} parent=1 // pred_check
      _
    $region23: #{tpu_custom_call.1} parent=1 // pred_check_branch
      %27 = sbr.rel (0) target = $region25
    $region24: #{tpu_custom_call.1} parent=1 // pred_region
      _
    $region25: #{tpu_custom_call.1} parent=1 // pred_fallthru
      _
    // Predicated region
    $region26: #{tpu_custom_call.1} parent=1 // pred_check
      _
    $region27: #{tpu_custom_call.1} parent=1 // pred_check_branch
      %29 = sbr.rel (0) target = $region29
    $region28: #{tpu_custom_call.1} parent=1 // pred_region
      _
    $region29: #{tpu_custom_call.1} parent=1 // pred_fallthru
      _
    // Predicated region
    $region30: #{tpu_custom_call.1} parent=1 // pred_check
      _
    $region31: #{tpu_custom_call.1} parent=1 // pred_check_branch
      %31 = sbr.rel (0) target = $region33
    $region32: #{tpu_custom_call.1} parent=1 // pred_region
      _
    $region33: #{tpu_custom_call.1} parent=1 // pred_fallthru
      _
    // Predicated region
    $region34: #{tpu_custom_call.1} parent=1 // pred_check
      _
    $region35: #{tpu_custom_call.1} parent=1 // pred_check_branch
      %33 = sbr.rel (0) target = $region37
    $region36: #{tpu_custom_call.1} parent=1 // pred_region
      _
    $region37: #{tpu_custom_call.1} parent=1 // pred_fallthru
      _
    // Predicated region
    $region38: #{tpu_custom_call.1} parent=1 // pred_check
      _
    $region39: #{tpu_custom_call.1} parent=1 // pred_check_branch
      %35 = sbr.rel (0) target = $region41
    $region40: #{tpu_custom_call.1} parent=1 // pred_region
      _
    $region41: #{tpu_custom_call.1} parent=1 // pred_fallthru
      _
    %v36 = vld [vmem:[%s0] sm:$0xff]
    %v37 = vld [vmem:[%s0 + $0x8] sm:$0xff]
    %v38 = vld [vmem:[%s1] sm:$0xff]
    %v39 = vld [vmem:[%s1 + $0x8] sm:$0xff]
    %v40 = vld [vmem:[%s1 + $0x10] sm:$0xff]
    %v41 = vld [vmem:[%s1 + $0x18] sm:$0xff]
    %v42 = vld [vmem:[%s1 + $0x20] sm:$0xff]
    %v43 = vld [vmem:[%s1 + $0x28] sm:$0xff]
    %v44 = vld [vmem:[%s1 + $0x30] sm:$0xff]
    %v45 = vld [vmem:[%s1 + $0x38] sm:$0xff]
    %v46 = vld [vmem:[%s2] sm:$0x1]
    %v48 = vlaneseq
    %v49 = vshrl.u32 %v48, 7
    %v50 = vsub.s32 0, %v49
    %v51 = vrot.slane %v46, %v50
    %vm53 = vcmask 261120
    %v55 = vsel %vm53, %v36, 0
    %v58 = vsel %vm53, %v37, 0
    %v61 = vsel %vm53, %v38, 0
    %v64 = vsel %vm53, %v39, 0
    %v67 = vsel %vm53, %v40, 0
    %v70 = vsel %vm53, %v41, 0
    %v73 = vsel %vm53, %v42, 0
    %v76 = vsel %vm53, %v43, 0
    %v79 = vsel %vm53, %v44, 0
    %v82 = vsel %vm53, %v45, 0
    %84 = vmatprep.subr.mxu0 0.0
    %85 = vmatpush1.xpose.msra.mxu0 %v61
    %86 = vmatprep.subr.mxu0 0.0
    %87 = vmatpush1.xpose.msra.mxu0 %v64
    %88 = vmatprep.subr.mxu0 0.0
    %89 = vmatpush1.xpose.msra.mxu0 %v67
    %90 = vmatprep.subr.mxu0 0.0
    %91 = vmatpush1.xpose.msra.mxu0 %v70
    %92 = vmatprep.subr.mxu0 0.0
    %93 = vmatpush1.xpose.msra.mxu0 %v73
    %94 = vmatprep.subr.mxu0 0.0
    %95 = vmatpush1.xpose.msra.mxu0 %v76
    %96 = vmatprep.subr.mxu0 0.0
    %97 = vmatpush1.xpose.msra.mxu0 %v79
    %98 = vmatprep.subr.mxu0 0.0
    %99 = vmatpush1.xpose.msra.mxu0 %v82
    %100 = vmatprep.subr.mxu0 0.0
    %101 = vmatpush1.xpose.msra.mxu0 0.0
    %102 = vmatprep.subr.mxu0 0.0
    %103 = vmatpush1.xpose.msra.mxu0 0.0
    %104 = vmatprep.subr.mxu0 0.0
    %105 = vmatpush1.xpose.msra.mxu0 0.0
    %106 = vmatprep.subr.mxu0 0.0
    %107 = vmatpush1.xpose.msra.mxu0 0.0
    %108 = vmatprep.subr.mxu0 0.0
    %109 = vmatpush1.xpose.msra.mxu0 0.0
    %110 = vmatprep.subr.mxu0 0.0
    %111 = vmatpush1.xpose.msra.mxu0 0.0
    %112 = vmatprep.subr.mxu0 0.0
    %113 = vmatpush1.xpose.msra.mxu0 0.0
    %114 = vmatprep.subr.mxu0 0.0
    %115 = vmatpush1.xpose.msra.mxu0 0.0
    %116 = vmatprep.subr.mxu0 0.0
    %117 = vmatpush1.xpose.msra.mxu0 0.0
    %118 = vmatprep.subr.mxu0 0.0
    %119 = vmatpush1.xpose.msra.mxu0 0.0
    %120 = vmatprep.subr.mxu0 0.0
    %121 = vmatpush1.xpose.msra.mxu0 0.0
    %122 = vmatprep.subr.mxu0 0.0
    %123 = vmatpush1.xpose.msra.mxu0 0.0
    %124 = vmatprep.subr.mxu0 0.0
    %125 = vmatpush1.xpose.msra.mxu0 0.0
    %126 = vmatprep.subr.mxu0 0.0
    %127 = vmatpush1.xpose.msra.mxu0 0.0
    %128 = vmatprep.subr.mxu0 0.0
    %129 = vmatpush1.xpose.msra.mxu0 0.0
    %130 = vmatprep.subr.mxu0 0.0
    %131 = vmatpush1.xpose.msra.mxu0 0.0
    %132 = vmatprep.subr.mxu0 0.0
    %133 = vmatpush1.xpose.msra.mxu0 0.0
    %134 = vmatprep.subr.mxu0 0.0
    %135 = vmatpush1.xpose.msra.mxu0 0.0
    %136 = vmatprep.subr.mxu0 0.0
    %137 = vmatpush1.xpose.msra.mxu0 0.0
    %138 = vmatprep.subr.mxu0 0.0
    %139 = vmatpush1.xpose.msra.mxu0 0.0
    %140 = vmatprep.subr.mxu0 0.0
    %141 = vmatpush1.xpose.msra.mxu0 0.0
    %142 = vmatprep.subr.mxu0 0.0
    %143 = vmatpush1.xpose.msra.mxu0 0.0
    %144 = vmatprep.subr.mxu0 0.0
    %145 = vmatpush1.xpose.msra.mxu0 0.0
    %146 = vmatprep.subr.mxu0 0.0
    %147 = vmatpush1.xpose.msra.mxu0 0.0
    %148 = vmatprep.mubr.f32.mxu0 0.0
    %149 = vmatmul.mubr.f32.gmra.mrb[0].mxu0 %v55
    %v150 = vpop.f32.mrb[0].mxu0
    %v151 = vadd.f32 %v51, %v150
    %v152 = vpop.f32.mrb[0].mxu0
    %153 = vmatprep.mubr.f32.mxu0 0.0
    %154 = vmatmul.mubr.f32.gmra.mrb[0].mxu0 %v58
    %v155 = vpop.f32.mrb[0].mxu0
    %v156 = vadd.f32 %v51, %v155
    %v157 = vpop.f32.mrb[0].mxu0
    %158 = vdwg.mxu0
    %v159 = vld [vmem:[%s3] sm:$0xff]
    %v160 = vld [vmem:[%s3 + $0x8] sm:$0xff]
    %v161 = vld [vmem:[%s3 + $0x10] sm:$0xff]
    %v162 = vld [vmem:[%s3 + $0x18] sm:$0xff]
    %v163 = vld [vmem:[%s3 + $0x20] sm:$0xff]
    %v164 = vld [vmem:[%s3 + $0x28] sm:$0xff]
    %v165 = vld [vmem:[%s3 + $0x30] sm:$0xff]
    %v166 = vld [vmem:[%s3 + $0x38] sm:$0xff]
    %v167 = vld [vmem:[%s4] sm:$0x1]
    %v169 = vlaneseq
    %v170 = vshrl.u32 %v169, 7
    %v171 = vsub.s32 0, %v170
    %v172 = vrot.slane %v167, %v171
    %v175 = vsel %vm53, %v159, 0
    %v178 = vsel %vm53, %v160, 0
    %v181 = vsel %vm53, %v161, 0
    %v184 = vsel %vm53, %v162, 0
    %v187 = vsel %vm53, %v163, 0
    %v190 = vsel %vm53, %v164, 0
    %v193 = vsel %vm53, %v165, 0
    %v196 = vsel %vm53, %v166, 0
    %198 = vmatprep.subr.mxu0 0.0
    %199 = vmatpush1.xpose.msra.mxu0 %v175
    %200 = vmatprep.subr.mxu0 0.0
    %201 = vmatpush1.xpose.msra.mxu0 %v178
    %202 = vmatprep.subr.mxu0 0.0
    %203 = vmatpush1.xpose.msra.mxu0 %v181
    %204 = vmatprep.subr.mxu0 0.0
    %205 = vmatpush1.xpose.msra.mxu0 %v184
    %206 = vmatprep.subr.mxu0 0.0
    %207 = vmatpush1.xpose.msra.mxu0 %v187
    %208 = vmatprep.subr.mxu0 0.0
    %209 = vmatpush1.xpose.msra.mxu0 %v190
    %210 = vmatprep.subr.mxu0 0.0
    %211 = vmatpush1.xpose.msra.mxu0 %v193
    %212 = vmatprep.subr.mxu0 0.0
    %213 = vmatpush1.xpose.msra.mxu0 %v196
    %214 = vmatprep.subr.mxu0 0.0
    %215 = vmatpush1.xpose.msra.mxu0 0.0
    %216 = vmatprep.subr.mxu0 0.0
    %217 = vmatpush1.xpose.msra.mxu0 0.0
    %218 = vmatprep.subr.mxu0 0.0
    %219 = vmatpush1.xpose.msra.mxu0 0.0
    %220 = vmatprep.subr.mxu0 0.0
    %221 = vmatpush1.xpose.msra.mxu0 0.0
    %222 = vmatprep.subr.mxu0 0.0
    %223 = vmatpush1.xpose.msra.mxu0 0.0
    %224 = vmatprep.subr.mxu0 0.0
    %225 = vmatpush1.xpose.msra.mxu0 0.0
    %226 = vmatprep.subr.mxu0 0.0
    %227 = vmatpush1.xpose.msra.mxu0 0.0
    %228 = vmatprep.subr.mxu0 0.0
    %229 = vmatpush1.xpose.msra.mxu0 0.0
    %230 = vmatprep.subr.mxu0 0.0
    %231 = vmatpush1.xpose.msra.mxu0 0.0
    %232 = vmatprep.subr.mxu0 0.0
    %233 = vmatpush1.xpose.msra.mxu0 0.0
    %234 = vmatprep.subr.mxu0 0.0
    %235 = vmatpush1.xpose.msra.mxu0 0.0
    %236 = vmatprep.subr.mxu0 0.0
    %237 = vmatpush1.xpose.msra.mxu0 0.0
    %238 = vmatprep.subr.mxu0 0.0
    %239 = vmatpush1.xpose.msra.mxu0 0.0
    %240 = vmatprep.subr.mxu0 0.0
    %241 = vmatpush1.xpose.msra.mxu0 0.0
    %242 = vmatprep.subr.mxu0 0.0
    %243 = vmatpush1.xpose.msra.mxu0 0.0
    %244 = vmatprep.subr.mxu0 0.0
    %245 = vmatpush1.xpose.msra.mxu0 0.0
    %246 = vmatprep.subr.mxu0 0.0
    %247 = vmatpush1.xpose.msra.mxu0 0.0
    %248 = vmatprep.subr.mxu0 0.0
    %249 = vmatpush1.xpose.msra.mxu0 0.0
    %250 = vmatprep.subr.mxu0 0.0
    %251 = vmatpush1.xpose.msra.mxu0 0.0
    %252 = vmatprep.subr.mxu0 0.0
    %253 = vmatpush1.xpose.msra.mxu0 0.0
    %254 = vmatprep.subr.mxu0 0.0
    %255 = vmatpush1.xpose.msra.mxu0 0.0
    %256 = vmatprep.subr.mxu0 0.0
    %257 = vmatpush1.xpose.msra.mxu0 0.0
    %258 = vmatprep.subr.mxu0 0.0
    %259 = vmatpush1.xpose.msra.mxu0 0.0
    %260 = vmatprep.subr.mxu0 0.0
    %261 = vmatpush1.xpose.msra.mxu0 0.0
    %262 = vmatprep.mubr.f32.mxu0 0.0
    %263 = vmatmul.mubr.f32.gmra.mrb[0].mxu0 %v55
    %v264 = vpop.f32.mrb[0].mxu0
    %v265 = vadd.f32 %v172, %v264
    %v266 = vpop.f32.mrb[0].mxu0
    %267 = vmatprep.mubr.f32.mxu0 0.0
    %268 = vmatmul.mubr.f32.gmra.mrb[0].mxu0 %v58
    %v269 = vpop.f32.mrb[0].mxu0
    %v270 = vadd.f32 %v172, %v269
    %v271 = vpop.f32.mrb[0].mxu0
    %272 = vdwg.mxu0
    %v273 = vld [vmem:[%s5] sm:$0xff]
    %v274 = vld [vmem:[%s5 + $0x8] sm:$0xff]
    %v275 = vmul.f32 %v151, %v273
    %v276 = vmul.f32 %v156, %v274
    %v277 = vld [vmem:[%s6] sm:$0xff]
    %v278 = vld [vmem:[%s6 + $0x8] sm:$0xff]
    %v279 = vmul.f32 %v265, %v277
    %v280 = vmul.f32 %v270, %v278
    %v281 = vadd.f32 %v275, %v279
    %v282 = vadd.f32 %v276, %v280
    %v283 = vld [vmem:[%s7] sm:$0xff]
    %v284 = vld [vmem:[%s7 + $0x8] sm:$0xff]
    %287 = vrot.lane.b32.xlu0 %v281, 96
    %v288 = vpop.permute.xlu0 %287
    %289 = vrot.lane.b32.xlu0 %v282, 96
    %v290 = vpop.permute.xlu0 %289
    %vm291 = vcmask 64512
    %v292 = vsel %vm291, %v281, 0
    %v294 = vsel %vm291, %v282, 0
    %v296 = vsel %vm291, %v288, 0
    %v298 = vsel %vm291, %v290, 0
    %300 = vmatprep.subr.mxu0 0.0
    %301 = vmatpush1.xpose.msra.mxu0 %v296
    %302 = vmatprep.subr.mxu0 0.0
    %303 = vmatpush1.xpose.msra.mxu0 %v298
    %304 = vmatprep.subr.mxu0 0.0
    %305 = vmatpush1.xpose.msra.mxu0 0.0
    %306 = vmatprep.subr.mxu0 0.0
    %307 = vmatpush1.xpose.msra.mxu0 0.0
    %308 = vmatprep.subr.mxu0 0.0
    %309 = vmatpush1.xpose.msra.mxu0 0.0
    %310 = vmatprep.subr.mxu0 0.0
    %311 = vmatpush1.xpose.msra.mxu0 0.0
    %312 = vmatprep.subr.mxu0 0.0
    %313 = vmatpush1.xpose.msra.mxu0 0.0
    %314 = vmatprep.subr.mxu0 0.0
    %315 = vmatpush1.xpose.msra.mxu0 0.0
    %316 = vmatprep.subr.mxu0 0.0
    %317 = vmatpush1.xpose.msra.mxu0 0.0
    %318 = vmatprep.subr.mxu0 0.0
    %319 = vmatpush1.xpose.msra.mxu0 0.0
    %320 = vmatprep.subr.mxu0 0.0
    %321 = vmatpush1.xpose.msra.mxu0 0.0
    %322 = vmatprep.subr.mxu0 0.0
    %323 = vmatpush1.xpose.msra.mxu0 0.0
    %324 = vmatprep.subr.mxu0 0.0
    %325 = vmatpush1.xpose.msra.mxu0 0.0
    %326 = vmatprep.subr.mxu0 0.0
    %327 = vmatpush1.xpose.msra.mxu0 0.0
    %328 = vmatprep.subr.mxu0 0.0
    %329 = vmatpush1.xpose.msra.mxu0 0.0
    %330 = vmatprep.subr.mxu0 0.0
    %331 = vmatpush1.xpose.msra.mxu0 0.0
    %332 = vmatprep.subr.mxu0 0.0
    %333 = vmatpush1.xpose.msra.mxu0 0.0
    %334 = vmatprep.subr.mxu0 0.0
    %335 = vmatpush1.xpose.msra.mxu0 0.0
    %336 = vmatprep.subr.mxu0 0.0
    %337 = vmatpush1.xpose.msra.mxu0 0.0
    %338 = vmatprep.subr.mxu0 0.0
    %339 = vmatpush1.xpose.msra.mxu0 0.0
    %340 = vmatprep.subr.mxu0 0.0
    %341 = vmatpush1.xpose.msra.mxu0 0.0
    %342 = vmatprep.subr.mxu0 0.0
    %343 = vmatpush1.xpose.msra.mxu0 0.0
    %344 = vmatprep.subr.mxu0 0.0
    %345 = vmatpush1.xpose.msra.mxu0 0.0
    %346 = vmatprep.subr.mxu0 0.0
    %347 = vmatpush1.xpose.msra.mxu0 0.0
    %348 = vmatprep.subr.mxu0 0.0
    %349 = vmatpush1.xpose.msra.mxu0 0.0
    %350 = vmatprep.subr.mxu0 0.0
    %351 = vmatpush1.xpose.msra.mxu0 0.0
    %352 = vmatprep.subr.mxu0 0.0
    %353 = vmatpush1.xpose.msra.mxu0 0.0
    %354 = vmatprep.subr.mxu0 0.0
    %355 = vmatpush1.xpose.msra.mxu0 0.0
    %356 = vmatprep.subr.mxu0 0.0
    %357 = vmatpush1.xpose.msra.mxu0 0.0
    %358 = vmatprep.subr.mxu0 0.0
    %359 = vmatpush1.xpose.msra.mxu0 0.0
    %360 = vmatprep.subr.mxu0 0.0
    %361 = vmatpush1.xpose.msra.mxu0 0.0
    %362 = vmatprep.subr.mxu0 0.0
    %363 = vmatpush1.xpose.msra.mxu0 0.0
    %364 = vmatprep.mubr.f32.mxu0 0.0
    %365 = vmatmul.mubr.f32.gmra.mrb[0].mxu0 %v292
    %v366 = vpop.f32.mrb[0].mxu0
    %v367 = vadd.f32 %v283, %v366
    %v368 = vpop.f32.mrb[0].mxu0
    %369 = vmatprep.mubr.f32.mxu0 0.0
    %370 = vmatmul.mubr.f32.gmra.mrb[0].mxu0 %v294
    %v371 = vpop.f32.mrb[0].mxu0
    %v372 = vadd.f32 %v284, %v371
    %v373 = vpop.f32.mrb[0].mxu0
    %374 = vdwg.mxu0
    %vm375 = vcmask 130048
    %v376 = vsel %vm375, %v367, -inf
    %377 = vmax.xlane.f32.xlu0 %v376
    %v378 = vpop.xlane.xlu0 %377
    %v379 = vsel %vm375, %v372, -inf
    %380 = vmax.xlane.f32.xlu0 %v379
    %v381 = vpop.xlane.xlu0 %380
    %v382 = vsub.f32 %v367, %v378
    %v383 = vsub.f32 %v372, %v381
    %v384 = vmul.f32 %v382, 1.442695
    %v385 = vpow.pop %v384
    %v386 = vmul.f32 %v383, 1.442695
    %v387 = vpow.pop %v386
    %v388 = vsel %vm375, %v385, 0.0
    %389 = vadd.xlane.f32.xlu0 %v388
    %v390 = vpop.xlane.xlu0 %389
    %v391 = vsel %vm375, %v387, 0.0
    %392 = vadd.xlane.f32.xlu0 %v391
    %v393 = vpop.xlane.xlu0 %392
    %v394 = vrcp.pop %v390
    %v395 = vrcp.pop %v393
    %v396 = vmul.f32 %v390, %v394
    %v397 = vmul.f32 %v393, %v395
    %v398 = vsub.f32 2.0, %v396
    %v399 = vsub.f32 2.0, %v397
    %v400 = vmul.f32 %v394, %v398
    %v401 = vmul.f32 %v395, %v399
    %402 = vrot.lane.b32.xlu0 %v281, 80
    %v403 = vpop.permute.xlu0 %402
    %404 = vrot.lane.b32.xlu0 %v282, 80
    %v405 = vpop.permute.xlu0 %404
    %v409 = vsel %vm375, %v385, 0
    %v412 = vsel %vm375, %v387, 0
    %414 = vmatprep.subr.mxu0 0.0
    %415 = vmatpush1.msra.mxu0 %v403
    %416 = vmatprep.subr.mxu0 0.0
    %417 = vmatpush1.msra.mxu0 %v405
    %418 = vmatprep.subr.mxu0 0.0
    %419 = vmatpush1.msra.mxu0 0.0
    %420 = vmatprep.subr.mxu0 0.0
    %421 = vmatpush1.msra.mxu0 0.0
    %422 = vmatprep.subr.mxu0 0.0
    %423 = vmatpush1.msra.mxu0 0.0
    %424 = vmatprep.subr.mxu0 0.0
    %425 = vmatpush1.msra.mxu0 0.0
    %426 = vmatprep.subr.mxu0 0.0
    %427 = vmatpush1.msra.mxu0 0.0
    %428 = vmatprep.subr.mxu0 0.0
    %429 = vmatpush1.msra.mxu0 0.0
    %430 = vmatprep.subr.mxu0 0.0
    %431 = vmatpush1.msra.mxu0 0.0
    %432 = vmatprep.subr.mxu0 0.0
    %433 = vmatpush1.msra.mxu0 0.0
    %434 = vmatprep.subr.mxu0 0.0
    %435 = vmatpush1.msra.mxu0 0.0
    %436 = vmatprep.subr.mxu0 0.0
    %437 = vmatpush1.msra.mxu0 0.0
    %438 = vmatprep.subr.mxu0 0.0
    %439 = vmatpush1.msra.mxu0 0.0
    %440 = vmatprep.subr.mxu0 0.0
    %441 = vmatpush1.msra.mxu0 0.0
    %442 = vmatprep.subr.mxu0 0.0
    %443 = vmatpush1.msra.mxu0 0.0
    %444 = vmatprep.subr.mxu0 0.0
    %445 = vmatpush1.msra.mxu0 0.0
    %446 = vmatprep.subr.mxu0 0.0
    %447 = vmatpush1.msra.mxu0 0.0
    %448 = vmatprep.subr.mxu0 0.0
    %449 = vmatpush1.msra.mxu0 0.0
    %450 = vmatprep.subr.mxu0 0.0
    %451 = vmatpush1.msra.mxu0 0.0
    %452 = vmatprep.subr.mxu0 0.0
    %453 = vmatpush1.msra.mxu0 0.0
    %454 = vmatprep.subr.mxu0 0.0
    %455 = vmatpush1.msra.mxu0 0.0
    %456 = vmatprep.subr.mxu0 0.0
    %457 = vmatpush1.msra.mxu0 0.0
    %458 = vmatprep.subr.mxu0 0.0
    %459 = vmatpush1.msra.mxu0 0.0
    %460 = vmatprep.subr.mxu0 0.0
    %461 = vmatpush1.msra.mxu0 0.0
    %462 = vmatprep.subr.mxu0 0.0
    %463 = vmatpush1.msra.mxu0 0.0
    %464 = vmatprep.subr.mxu0 0.0
    %465 = vmatpush1.msra.mxu0 0.0
    %466 = vmatprep.subr.mxu0 0.0
    %467 = vmatpush1.msra.mxu0 0.0
    %468 = vmatprep.subr.mxu0 0.0
    %469 = vmatpush1.msra.mxu0 0.0
    %470 = vmatprep.subr.mxu0 0.0
    %471 = vmatpush1.msra.mxu0 0.0
    %472 = vmatprep.subr.mxu0 0.0
    %473 = vmatpush1.msra.mxu0 0.0
    %474 = vmatprep.subr.mxu0 0.0
    %475 = vmatpush1.msra.mxu0 0.0
    %476 = vmatprep.subr.mxu0 0.0
    %477 = vmatpush1.msra.mxu0 0.0
    %478 = vmatprep.mubr.f32.mxu0 0.0
    %479 = vmatmul.mubr.f32.gmra.mrb[0].mxu0 %v409
    %v480 = vpop.f32.mrb[0].mxu0
    %v481 = vadd.f32 0.0, %v480
    %v482 = vpop.f32.mrb[0].mxu0
    %483 = vmatprep.mubr.f32.mxu0 0.0
    %484 = vmatmul.mubr.f32.gmra.mrb[0].mxu0 %v412
    %v485 = vpop.f32.mrb[0].mxu0
    %v486 = vadd.f32 0.0, %v485
    %v487 = vpop.f32.mrb[0].mxu0
    %488 = vdwg.mxu0
    %v489 = vmul.f32 %v481, %v400
    %v490 = vmul.f32 %v486, %v401
    %491 = vrot.lane.b32.xlu0 %v281, 120
    %v492 = vpop.permute.xlu0 %491
    %493 = vrot.lane.b32.xlu0 %v282, 120
    %v494 = vpop.permute.xlu0 %493
    %v495 = vsel %vm291, %v492, 0
    %v497 = vsel %vm291, %v494, 0
    %499 = vmatprep.subr.mxu0 0.0
    %500 = vmatpush1.xpose.msra.mxu0 %v296
    %501 = vmatprep.subr.mxu0 0.0
    %502 = vmatpush1.xpose.msra.mxu0 %v298
    %503 = vmatprep.subr.mxu0 0.0
    %504 = vmatpush1.xpose.msra.mxu0 0.0
    %505 = vmatprep.subr.mxu0 0.0
    %506 = vmatpush1.xpose.msra.mxu0 0.0
    %507 = vmatprep.subr.mxu0 0.0
    %508 = vmatpush1.xpose.msra.mxu0 0.0
    %509 = vmatprep.subr.mxu0 0.0
    %510 = vmatpush1.xpose.msra.mxu0 0.0
    %511 = vmatprep.subr.mxu0 0.0
    %512 = vmatpush1.xpose.msra.mxu0 0.0
    %513 = vmatprep.subr.mxu0 0.0
    %514 = vmatpush1.xpose.msra.mxu0 0.0
    %515 = vmatprep.subr.mxu0 0.0
    %516 = vmatpush1.xpose.msra.mxu0 0.0
    %517 = vmatprep.subr.mxu0 0.0
    %518 = vmatpush1.xpose.msra.mxu0 0.0
    %519 = vmatprep.subr.mxu0 0.0
    %520 = vmatpush1.xpose.msra.mxu0 0.0
    %521 = vmatprep.subr.mxu0 0.0
    %522 = vmatpush1.xpose.msra.mxu0 0.0
    %523 = vmatprep.subr.mxu0 0.0
    %524 = vmatpush1.xpose.msra.mxu0 0.0
    %525 = vmatprep.subr.mxu0 0.0
    %526 = vmatpush1.xpose.msra.mxu0 0.0
    %527 = vmatprep.subr.mxu0 0.0
    %528 = vmatpush1.xpose.msra.mxu0 0.0
    %529 = vmatprep.subr.mxu0 0.0
    %530 = vmatpush1.xpose.msra.mxu0 0.0
    %531 = vmatprep.subr.mxu0 0.0
    %532 = vmatpush1.xpose.msra.mxu0 0.0
    %533 = vmatprep.subr.mxu0 0.0
    %534 = vmatpush1.xpose.msra.mxu0 0.0
    %535 = vmatprep.subr.mxu0 0.0
    %536 = vmatpush1.xpose.msra.mxu0 0.0
    %537 = vmatprep.subr.mxu0 0.0
    %538 = vmatpush1.xpose.msra.mxu0 0.0
    %539 = vmatprep.subr.mxu0 0.0
    %540 = vmatpush1.xpose.msra.mxu0 0.0
    %541 = vmatprep.subr.mxu0 0.0
    %542 = vmatpush1.xpose.msra.mxu0 0.0
    %543 = vmatprep.subr.mxu0 0.0
    %544 = vmatpush1.xpose.msra.mxu0 0.0
    %545 = vmatprep.subr.mxu0 0.0
    %546 = vmatpush1.xpose.msra.mxu0 0.0
    %547 = vmatprep.subr.mxu0 0.0
    %548 = vmatpush1.xpose.msra.mxu0 0.0
    %549 = vmatprep.subr.mxu0 0.0
    %550 = vmatpush1.xpose.msra.mxu0 0.0
    %551 = vmatprep.subr.mxu0 0.0
    %552 = vmatpush1.xpose.msra.mxu0 0.0
    %553 = vmatprep.subr.mxu0 0.0
    %554 = vmatpush1.xpose.msra.mxu0 0.0
    %555 = vmatprep.subr.mxu0 0.0
    %556 = vmatpush1.xpose.msra.mxu0 0.0
    %557 = vmatprep.subr.mxu0 0.0
    %558 = vmatpush1.xpose.msra.mxu0 0.0
    %559 = vmatprep.subr.mxu0 0.0
    %560 = vmatpush1.xpose.msra.mxu0 0.0
    %561 = vmatprep.subr.mxu0 0.0
    %562 = vmatpush1.xpose.msra.mxu0 0.0
    %563 = vmatprep.mubr.f32.mxu0 0.0
    %564 = vmatmul.mubr.f32.gmra.mrb[0].mxu0 %v495
    %v565 = vpop.f32.mrb[0].mxu0
    %v566 = vadd.f32 %v283, %v565
    %v567 = vpop.f32.mrb[0].mxu0
    %568 = vmatprep.mubr.f32.mxu0 0.0
    %569 = vmatmul.mubr.f32.gmra.mrb[0].mxu0 %v497
    %v570 = vpop.f32.mrb[0].mxu0
    %v571 = vadd.f32 %v284, %v570
    %v572 = vpop.f32.mrb[0].mxu0
    %573 = vdwg.mxu0
    %v574 = vsel %vm375, %v566, -inf
    %575 = vmax.xlane.f32.xlu0 %v574
    %v576 = vpop.xlane.xlu0 %575
    %v577 = vsel %vm375, %v571, -inf
    %578 = vmax.xlane.f32.xlu0 %v577
    %v579 = vpop.xlane.xlu0 %578
    %v580 = vsub.f32 %v566, %v576
    %v581 = vsub.f32 %v571, %v579
    %v582 = vmul.f32 %v580, 1.442695
    %v583 = vpow.pop %v582
    %v584 = vmul.f32 %v581, 1.442695
    %v585 = vpow.pop %v584
    %v586 = vsel %vm375, %v583, 0.0
    %587 = vadd.xlane.f32.xlu0 %v586
    %v588 = vpop.xlane.xlu0 %587
    %v589 = vsel %vm375, %v585, 0.0
    %590 = vadd.xlane.f32.xlu0 %v589
    %v591 = vpop.xlane.xlu0 %590
    %v592 = vrcp.pop %v588
    %v593 = vrcp.pop %v591
    %v594 = vmul.f32 %v588, %v592
    %v595 = vmul.f32 %v591, %v593
    %v596 = vsub.f32 2.0, %v594
    %v597 = vsub.f32 2.0, %v595
    %v598 = vmul.f32 %v592, %v596
    %v599 = vmul.f32 %v593, %v597
    %v601 = vsel %vm375, %v583, 0
    %v604 = vsel %vm375, %v585, 0
    %606 = vmatprep.subr.mxu0 0.0
    %607 = vmatpush1.msra.mxu0 %v403
    %608 = vmatprep.subr.mxu0 0.0
    %609 = vmatpush1.msra.mxu0 %v405
    %610 = vmatprep.subr.mxu0 0.0
    %611 = vmatpush1.msra.mxu0 0.0
    %612 = vmatprep.subr.mxu0 0.0
    %613 = vmatpush1.msra.mxu0 0.0
    %614 = vmatprep.subr.mxu0 0.0
    %615 = vmatpush1.msra.mxu0 0.0
    %616 = vmatprep.subr.mxu0 0.0
    %617 = vmatpush1.msra.mxu0 0.0
    %618 = vmatprep.subr.mxu0 0.0
    %619 = vmatpush1.msra.mxu0 0.0
    %620 = vmatprep.subr.mxu0 0.0
    %621 = vmatpush1.msra.mxu0 0.0
    %622 = vmatprep.subr.mxu0 0.0
    %623 = vmatpush1.msra.mxu0 0.0
    %624 = vmatprep.subr.mxu0 0.0
    %625 = vmatpush1.msra.mxu0 0.0
    %626 = vmatprep.subr.mxu0 0.0
    %627 = vmatpush1.msra.mxu0 0.0
    %628 = vmatprep.subr.mxu0 0.0
    %629 = vmatpush1.msra.mxu0 0.0
    %630 = vmatprep.subr.mxu0 0.0
    %631 = vmatpush1.msra.mxu0 0.0
    %632 = vmatprep.subr.mxu0 0.0
    %633 = vmatpush1.msra.mxu0 0.0
    %634 = vmatprep.subr.mxu0 0.0
    %635 = vmatpush1.msra.mxu0 0.0
    %636 = vmatprep.subr.mxu0 0.0
    %637 = vmatpush1.msra.mxu0 0.0
    %638 = vmatprep.subr.mxu0 0.0
    %639 = vmatpush1.msra.mxu0 0.0
    %640 = vmatprep.subr.mxu0 0.0
    %641 = vmatpush1.msra.mxu0 0.0
    %642 = vmatprep.subr.mxu0 0.0
    %643 = vmatpush1.msra.mxu0 0.0
    %644 = vmatprep.subr.mxu0 0.0
    %645 = vmatpush1.msra.mxu0 0.0
    %646 = vmatprep.subr.mxu0 0.0
    %647 = vmatpush1.msra.mxu0 0.0
    %648 = vmatprep.subr.mxu0 0.0
    %649 = vmatpush1.msra.mxu0 0.0
    %650 = vmatprep.subr.mxu0 0.0
    %651 = vmatpush1.msra.mxu0 0.0
    %652 = vmatprep.subr.mxu0 0.0
    %653 = vmatpush1.msra.mxu0 0.0
    %654 = vmatprep.subr.mxu0 0.0
    %655 = vmatpush1.msra.mxu0 0.0
    %656 = vmatprep.subr.mxu0 0.0
    %657 = vmatpush1.msra.mxu0 0.0
    %658 = vmatprep.subr.mxu0 0.0
    %659 = vmatpush1.msra.mxu0 0.0
    %660 = vmatprep.subr.mxu0 0.0
    %661 = vmatpush1.msra.mxu0 0.0
    %662 = vmatprep.subr.mxu0 0.0
    %663 = vmatpush1.msra.mxu0 0.0
    %664 = vmatprep.subr.mxu0 0.0
    %665 = vmatpush1.msra.mxu0 0.0
    %666 = vmatprep.subr.mxu0 0.0
    %667 = vmatpush1.msra.mxu0 0.0
    %668 = vmatprep.subr.mxu0 0.0
    %669 = vmatpush1.msra.mxu0 0.0
    %670 = vmatprep.mubr.f32.mxu0 0.0
    %671 = vmatmul.mubr.f32.gmra.mrb[0].mxu0 %v601
    %v672 = vpop.f32.mrb[0].mxu0
    %v673 = vadd.f32 0.0, %v672
    %v674 = vpop.f32.mrb[0].mxu0
    %675 = vmatprep.mubr.f32.mxu0 0.0
    %676 = vmatmul.mubr.f32.gmra.mrb[0].mxu0 %v604
    %v677 = vpop.f32.mrb[0].mxu0
    %v678 = vadd.f32 0.0, %v677
    %v679 = vpop.f32.mrb[0].mxu0
    %680 = vdwg.mxu0
    %v681 = vmul.f32 %v673, %v598
    %v682 = vmul.f32 %v678, %v599
    %683 = vrot.lane.b32.xlu0 %v281, 112
    %v684 = vpop.permute.xlu0 %683
    %685 = vrot.lane.b32.xlu0 %v282, 112
    %v686 = vpop.permute.xlu0 %685
    %687 = vrot.lane.b32.xlu0 %v281, 88
    %v688 = vpop.permute.xlu0 %687
    %689 = vrot.lane.b32.xlu0 %v282, 88
    %v690 = vpop.permute.xlu0 %689
    %v691 = vsel %vm291, %v684, 0
    %v693 = vsel %vm291, %v686, 0
    %v695 = vsel %vm291, %v688, 0
    %v697 = vsel %vm291, %v690, 0
    %699 = vmatprep.subr.mxu0 0.0
    %700 = vmatpush1.xpose.msra.mxu0 %v695
    %701 = vmatprep.subr.mxu0 0.0
    %702 = vmatpush1.xpose.msra.mxu0 %v697
    %703 = vmatprep.subr.mxu0 0.0
    %704 = vmatpush1.xpose.msra.mxu0 0.0
    %705 = vmatprep.subr.mxu0 0.0
    %706 = vmatpush1.xpose.msra.mxu0 0.0
    %707 = vmatprep.subr.mxu0 0.0
    %708 = vmatpush1.xpose.msra.mxu0 0.0
    %709 = vmatprep.subr.mxu0 0.0
    %710 = vmatpush1.xpose.msra.mxu0 0.0
    %711 = vmatprep.subr.mxu0 0.0
    %712 = vmatpush1.xpose.msra.mxu0 0.0
    %713 = vmatprep.subr.mxu0 0.0
    %714 = vmatpush1.xpose.msra.mxu0 0.0
    %715 = vmatprep.subr.mxu0 0.0
    %716 = vmatpush1.xpose.msra.mxu0 0.0
    %717 = vmatprep.subr.mxu0 0.0
    %718 = vmatpush1.xpose.msra.mxu0 0.0
    %719 = vmatprep.subr.mxu0 0.0
    %720 = vmatpush1.xpose.msra.mxu0 0.0
    %721 = vmatprep.subr.mxu0 0.0
    %722 = vmatpush1.xpose.msra.mxu0 0.0
    %723 = vmatprep.subr.mxu0 0.0
    %724 = vmatpush1.xpose.msra.mxu0 0.0
    %725 = vmatprep.subr.mxu0 0.0
    %726 = vmatpush1.xpose.msra.mxu0 0.0
    %727 = vmatprep.subr.mxu0 0.0
    %728 = vmatpush1.xpose.msra.mxu0 0.0
    %729 = vmatprep.subr.mxu0 0.0
    %730 = vmatpush1.xpose.msra.mxu0 0.0
    %731 = vmatprep.subr.mxu0 0.0
    %732 = vmatpush1.xpose.msra.mxu0 0.0
    %733 = vmatprep.subr.mxu0 0.0
    %734 = vmatpush1.xpose.msra.mxu0 0.0
    %735 = vmatprep.subr.mxu0 0.0
    %736 = vmatpush1.xpose.msra.mxu0 0.0
    %737 = vmatprep.subr.mxu0 0.0
    %738 = vmatpush1.xpose.msra.mxu0 0.0
    %739 = vmatprep.subr.mxu0 0.0
    %740 = vmatpush1.xpose.msra.mxu0 0.0
    %741 = vmatprep.subr.mxu0 0.0
    %742 = vmatpush1.xpose.msra.mxu0 0.0
    %743 = vmatprep.subr.mxu0 0.0
    %744 = vmatpush1.xpose.msra.mxu0 0.0
    %745 = vmatprep.subr.mxu0 0.0
    %746 = vmatpush1.xpose.msra.mxu0 0.0
    %747 = vmatprep.subr.mxu0 0.0
    %748 = vmatpush1.xpose.msra.mxu0 0.0
    %749 = vmatprep.subr.mxu0 0.0
    %750 = vmatpush1.xpose.msra.mxu0 0.0
    %751 = vmatprep.subr.mxu0 0.0
    %752 = vmatpush1.xpose.msra.mxu0 0.0
    %753 = vmatprep.subr.mxu0 0.0
    %754 = vmatpush1.xpose.msra.mxu0 0.0
    %755 = vmatprep.subr.mxu0 0.0
    %756 = vmatpush1.xpose.msra.mxu0 0.0
    %757 = vmatprep.subr.mxu0 0.0
    %758 = vmatpush1.xpose.msra.mxu0 0.0
    %759 = vmatprep.subr.mxu0 0.0
    %760 = vmatpush1.xpose.msra.mxu0 0.0
    %761 = vmatprep.subr.mxu0 0.0
    %762 = vmatpush1.xpose.msra.mxu0 0.0
    %763 = vmatprep.mubr.f32.mxu0 0.0
    %764 = vmatmul.mubr.f32.gmra.mrb[0].mxu0 %v691
    %v765 = vpop.f32.mrb[0].mxu0
    %v766 = vadd.f32 %v283, %v765
    %v767 = vpop.f32.mrb[0].mxu0
    %768 = vmatprep.mubr.f32.mxu0 0.0
    %769 = vmatmul.mubr.f32.gmra.mrb[0].mxu0 %v693
    %v770 = vpop.f32.mrb[0].mxu0
    %v771 = vadd.f32 %v284, %v770
    %v772 = vpop.f32.mrb[0].mxu0
    %773 = vdwg.mxu0
    %v774 = vsel %vm375, %v766, -inf
    %775 = vmax.xlane.f32.xlu0 %v774
    %v776 = vpop.xlane.xlu0 %775
    %v777 = vsel %vm375, %v771, -inf
    %778 = vmax.xlane.f32.xlu0 %v777
    %v779 = vpop.xlane.xlu0 %778
    %v780 = vsub.f32 %v766, %v776
    %v781 = vsub.f32 %v771, %v779
    %v782 = vmul.f32 %v780, 1.442695
    %v783 = vpow.pop %v782
    %v784 = vmul.f32 %v781, 1.442695
    %v785 = vpow.pop %v784
    %v786 = vsel %vm375, %v783, 0.0
    %787 = vadd.xlane.f32.xlu0 %v786
    %v788 = vpop.xlane.xlu0 %787
    %v789 = vsel %vm375, %v785, 0.0
    %790 = vadd.xlane.f32.xlu0 %v789
    %v791 = vpop.xlane.xlu0 %790
    %v792 = vrcp.pop %v788
    %v793 = vrcp.pop %v791
    %v794 = vmul.f32 %v788, %v792
    %v795 = vmul.f32 %v791, %v793
    %v796 = vsub.f32 2.0, %v794
    %v797 = vsub.f32 2.0, %v795
    %v798 = vmul.f32 %v792, %v796
    %v799 = vmul.f32 %v793, %v797
    %800 = vrot.lane.b32.xlu0 %v281, 72
    %v801 = vpop.permute.xlu0 %800
    %802 = vrot.lane.b32.xlu0 %v282, 72
    %v803 = vpop.permute.xlu0 %802
    %v807 = vsel %vm375, %v783, 0
    %v810 = vsel %vm375, %v785, 0
    %812 = vmatprep.subr.mxu0 0.0
    %813 = vmatpush1.msra.mxu0 %v801
    %814 = vmatprep.subr.mxu0 0.0
    %815 = vmatpush1.msra.mxu0 %v803
    %816 = vmatprep.subr.mxu0 0.0
    %817 = vmatpush1.msra.mxu0 0.0
    %818 = vmatprep.subr.mxu0 0.0
    %819 = vmatpush1.msra.mxu0 0.0
    %820 = vmatprep.subr.mxu0 0.0
    %821 = vmatpush1.msra.mxu0 0.0
    %822 = vmatprep.subr.mxu0 0.0
    %823 = vmatpush1.msra.mxu0 0.0
    %824 = vmatprep.subr.mxu0 0.0
    %825 = vmatpush1.msra.mxu0 0.0
    %826 = vmatprep.subr.mxu0 0.0
    %827 = vmatpush1.msra.mxu0 0.0
    %828 = vmatprep.subr.mxu0 0.0
    %829 = vmatpush1.msra.mxu0 0.0
    %830 = vmatprep.subr.mxu0 0.0
    %831 = vmatpush1.msra.mxu0 0.0
    %832 = vmatprep.subr.mxu0 0.0
    %833 = vmatpush1.msra.mxu0 0.0
    %834 = vmatprep.subr.mxu0 0.0
    %835 = vmatpush1.msra.mxu0 0.0
    %836 = vmatprep.subr.mxu0 0.0
    %837 = vmatpush1.msra.mxu0 0.0
    %838 = vmatprep.subr.mxu0 0.0
    %839 = vmatpush1.msra.mxu0 0.0
    %840 = vmatprep.subr.mxu0 0.0
    %841 = vmatpush1.msra.mxu0 0.0
    %842 = vmatprep.subr.mxu0 0.0
    %843 = vmatpush1.msra.mxu0 0.0
    %844 = vmatprep.subr.mxu0 0.0
    %845 = vmatpush1.msra.mxu0 0.0
    %846 = vmatprep.subr.mxu0 0.0
    %847 = vmatpush1.msra.mxu0 0.0
    %848 = vmatprep.subr.mxu0 0.0
    %849 = vmatpush1.msra.mxu0 0.0
    %850 = vmatprep.subr.mxu0 0.0
    %851 = vmatpush1.msra.mxu0 0.0
    %852 = vmatprep.subr.mxu0 0.0
    %853 = vmatpush1.msra.mxu0 0.0
    %854 = vmatprep.subr.mxu0 0.0
    %855 = vmatpush1.msra.mxu0 0.0
    %856 = vmatprep.subr.mxu0 0.0
    %857 = vmatpush1.msra.mxu0 0.0
    %858 = vmatprep.subr.mxu0 0.0
    %859 = vmatpush1.msra.mxu0 0.0
    %860 = vmatprep.subr.mxu0 0.0
    %861 = vmatpush1.msra.mxu0 0.0
    %862 = vmatprep.subr.mxu0 0.0
    %863 = vmatpush1.msra.mxu0 0.0
    %864 = vmatprep.subr.mxu0 0.0
    %865 = vmatpush1.msra.mxu0 0.0
    %866 = vmatprep.subr.mxu0 0.0
    %867 = vmatpush1.msra.mxu0 0.0
    %868 = vmatprep.subr.mxu0 0.0
    %869 = vmatpush1.msra.mxu0 0.0
    %870 = vmatprep.subr.mxu0 0.0
    %871 = vmatpush1.msra.mxu0 0.0
    %872 = vmatprep.subr.mxu0 0.0
    %873 = vmatpush1.msra.mxu0 0.0
    %874 = vmatprep.subr.mxu0 0.0
    %875 = vmatpush1.msra.mxu0 0.0
    %876 = vmatprep.mubr.f32.mxu0 0.0
    %877 = vmatmul.mubr.f32.gmra.mrb[0].mxu0 %v807
    %v878 = vpop.f32.mrb[0].mxu0
    %v879 = vadd.f32 0.0, %v878
    %v880 = vpop.f32.mrb[0].mxu0
    %881 = vmatprep.mubr.f32.mxu0 0.0
    %882 = vmatmul.mubr.f32.gmra.mrb[0].mxu0 %v810
    %v883 = vpop.f32.mrb[0].mxu0
    %v884 = vadd.f32 0.0, %v883
    %v885 = vpop.f32.mrb[0].mxu0
    %886 = vdwg.mxu0
    %v887 = vmul.f32 %v879, %v798
    %v888 = vmul.f32 %v884, %v799
    %889 = vrot.lane.b32.xlu0 %v281, 104
    %v890 = vpop.permute.xlu0 %889
    %891 = vrot.lane.b32.xlu0 %v282, 104
    %v892 = vpop.permute.xlu0 %891
    %v893 = vsel %vm291, %v890, 0
    %v895 = vsel %vm291, %v892, 0
    %897 = vmatprep.subr.mxu0 0.0
    %898 = vmatpush1.xpose.msra.mxu0 %v695
    %899 = vmatprep.subr.mxu0 0.0
    %900 = vmatpush1.xpose.msra.mxu0 %v697
    %901 = vmatprep.subr.mxu0 0.0
    %902 = vmatpush1.xpose.msra.mxu0 0.0
    %903 = vmatprep.subr.mxu0 0.0
    %904 = vmatpush1.xpose.msra.mxu0 0.0
    %905 = vmatprep.subr.mxu0 0.0
    %906 = vmatpush1.xpose.msra.mxu0 0.0
    %907 = vmatprep.subr.mxu0 0.0
    %908 = vmatpush1.xpose.msra.mxu0 0.0
    %909 = vmatprep.subr.mxu0 0.0
    %910 = vmatpush1.xpose.msra.mxu0 0.0
    %911 = vmatprep.subr.mxu0 0.0
    %912 = vmatpush1.xpose.msra.mxu0 0.0
    %913 = vmatprep.subr.mxu0 0.0
    %914 = vmatpush1.xpose.msra.mxu0 0.0
    %915 = vmatprep.subr.mxu0 0.0
    %916 = vmatpush1.xpose.msra.mxu0 0.0
    %917 = vmatprep.subr.mxu0 0.0
    %918 = vmatpush1.xpose.msra.mxu0 0.0
    %919 = vmatprep.subr.mxu0 0.0
    %920 = vmatpush1.xpose.msra.mxu0 0.0
    %921 = vmatprep.subr.mxu0 0.0
    %922 = vmatpush1.xpose.msra.mxu0 0.0
    %923 = vmatprep.subr.mxu0 0.0
    %924 = vmatpush1.xpose.msra.mxu0 0.0
    %925 = vmatprep.subr.mxu0 0.0
    %926 = vmatpush1.xpose.msra.mxu0 0.0
    %927 = vmatprep.subr.mxu0 0.0
    %928 = vmatpush1.xpose.msra.mxu0 0.0
    %929 = vmatprep.subr.mxu0 0.0
    %930 = vmatpush1.xpose.msra.mxu0 0.0
    %931 = vmatprep.subr.mxu0 0.0
    %932 = vmatpush1.xpose.msra.mxu0 0.0
    %933 = vmatprep.subr.mxu0 0.0
    %934 = vmatpush1.xpose.msra.mxu0 0.0
    %935 = vmatprep.subr.mxu0 0.0
    %936 = vmatpush1.xpose.msra.mxu0 0.0
    %937 = vmatprep.subr.mxu0 0.0
    %938 = vmatpush1.xpose.msra.mxu0 0.0
    %939 = vmatprep.subr.mxu0 0.0
    %940 = vmatpush1.xpose.msra.mxu0 0.0
    %941 = vmatprep.subr.mxu0 0.0
    %942 = vmatpush1.xpose.msra.mxu0 0.0
    %943 = vmatprep.subr.mxu0 0.0
    %944 = vmatpush1.xpose.msra.mxu0 0.0
    %945 = vmatprep.subr.mxu0 0.0
    %946 = vmatpush1.xpose.msra.mxu0 0.0
    %947 = vmatprep.subr.mxu0 0.0
    %948 = vmatpush1.xpose.msra.mxu0 0.0
    %949 = vmatprep.subr.mxu0 0.0
    %950 = vmatpush1.xpose.msra.mxu0 0.0
    %951 = vmatprep.subr.mxu0 0.0
    %952 = vmatpush1.xpose.msra.mxu0 0.0
    %953 = vmatprep.subr.mxu0 0.0
    %954 = vmatpush1.xpose.msra.mxu0 0.0
    %955 = vmatprep.subr.mxu0 0.0
    %956 = vmatpush1.xpose.msra.mxu0 0.0
    %957 = vmatprep.subr.mxu0 0.0
    %958 = vmatpush1.xpose.msra.mxu0 0.0
    %959 = vmatprep.subr.mxu0 0.0
    %960 = vmatpush1.xpose.msra.mxu0 0.0
    %961 = vmatprep.mubr.f32.mxu0 0.0
    %962 = vmatmul.mubr.f32.gmra.mrb[0].mxu0 %v893
    %v963 = vpop.f32.mrb[0].mxu0
    %v964 = vadd.f32 %v283, %v963
    %v965 = vpop.f32.mrb[0].mxu0
    %966 = vmatprep.mubr.f32.mxu0 0.0
    %967 = vmatmul.mubr.f32.gmra.mrb[0].mxu0 %v895
    %v968 = vpop.f32.mrb[0].mxu0
    %v969 = vadd.f32 %v284, %v968
    %v970 = vpop.f32.mrb[0].mxu0
    %971 = vdwg.mxu0
    %v972 = vsel %vm375, %v964, -inf
    %973 = vmax.xlane.f32.xlu0 %v972
    %v974 = vpop.xlane.xlu0 %973
    %v975 = vsel %vm375, %v969, -inf
    %976 = vmax.xlane.f32.xlu0 %v975
    %v977 = vpop.xlane.xlu0 %976
    %v978 = vsub.f32 %v964, %v974
    %v979 = vsub.f32 %v969, %v977
    %v980 = vmul.f32 %v978, 1.442695
    %v981 = vpow.pop %v980
    %v982 = vmul.f32 %v979, 1.442695
    %v983 = vpow.pop %v982
    %v984 = vsel %vm375, %v981, 0.0
    %985 = vadd.xlane.f32.xlu0 %v984
    %v986 = vpop.xlane.xlu0 %985
    %v987 = vsel %vm375, %v983, 0.0
    %988 = vadd.xlane.f32.xlu0 %v987
    %v989 = vpop.xlane.xlu0 %988
    %v990 = vrcp.pop %v986
    %v991 = vrcp.pop %v989
    %v992 = vmul.f32 %v986, %v990
    %v993 = vmul.f32 %v989, %v991
    %v994 = vsub.f32 2.0, %v992
    %v995 = vsub.f32 2.0, %v993
    %v996 = vmul.f32 %v990, %v994
    %v997 = vmul.f32 %v991, %v995
    %v999 = vsel %vm375, %v981, 0
    %v1002 = vsel %vm375, %v983, 0
    %1004 = vmatprep.subr.mxu0 0.0
    %1005 = vmatpush1.msra.mxu0 %v801
    %1006 = vmatprep.subr.mxu0 0.0
    %1007 = vmatpush1.msra.mxu0 %v803
    %1008 = vmatprep.subr.mxu0 0.0
    %1009 = vmatpush1.msra.mxu0 0.0
    %1010 = vmatprep.subr.mxu0 0.0
    %1011 = vmatpush1.msra.mxu0 0.0
    %1012 = vmatprep.subr.mxu0 0.0
    %1013 = vmatpush1.msra.mxu0 0.0
    %1014 = vmatprep.subr.mxu0 0.0
    %1015 = vmatpush1.msra.mxu0 0.0
    %1016 = vmatprep.subr.mxu0 0.0
    %1017 = vmatpush1.msra.mxu0 0.0
    %1018 = vmatprep.subr.mxu0 0.0
    %1019 = vmatpush1.msra.mxu0 0.0
    %1020 = vmatprep.subr.mxu0 0.0
    %1021 = vmatpush1.msra.mxu0 0.0
    %1022 = vmatprep.subr.mxu0 0.0
    %1023 = vmatpush1.msra.mxu0 0.0
    %1024 = vmatprep.subr.mxu0 0.0
    %1025 = vmatpush1.msra.mxu0 0.0
    %1026 = vmatprep.subr.mxu0 0.0
    %1027 = vmatpush1.msra.mxu0 0.0
    %1028 = vmatprep.subr.mxu0 0.0
    %1029 = vmatpush1.msra.mxu0 0.0
    %1030 = vmatprep.subr.mxu0 0.0
    %1031 = vmatpush1.msra.mxu0 0.0
    %1032 = vmatprep.subr.mxu0 0.0
    %1033 = vmatpush1.msra.mxu0 0.0
    %1034 = vmatprep.subr.mxu0 0.0
    %1035 = vmatpush1.msra.mxu0 0.0
    %1036 = vmatprep.subr.mxu0 0.0
    %1037 = vmatpush1.msra.mxu0 0.0
    %1038 = vmatprep.subr.mxu0 0.0
    %1039 = vmatpush1.msra.mxu0 0.0
    %1040 = vmatprep.subr.mxu0 0.0
    %1041 = vmatpush1.msra.mxu0 0.0
    %1042 = vmatprep.subr.mxu0 0.0
    %1043 = vmatpush1.msra.mxu0 0.0
    %1044 = vmatprep.subr.mxu0 0.0
    %1045 = vmatpush1.msra.mxu0 0.0
    %1046 = vmatprep.subr.mxu0 0.0
    %1047 = vmatpush1.msra.mxu0 0.0
    %1048 = vmatprep.subr.mxu0 0.0
    %1049 = vmatpush1.msra.mxu0 0.0
    %1050 = vmatprep.subr.mxu0 0.0
    %1051 = vmatpush1.msra.mxu0 0.0
    %1052 = vmatprep.subr.mxu0 0.0
    %1053 = vmatpush1.msra.mxu0 0.0
    %1054 = vmatprep.subr.mxu0 0.0
    %1055 = vmatpush1.msra.mxu0 0.0
    %1056 = vmatprep.subr.mxu0 0.0
    %1057 = vmatpush1.msra.mxu0 0.0
    %1058 = vmatprep.subr.mxu0 0.0
    %1059 = vmatpush1.msra.mxu0 0.0
    %1060 = vmatprep.subr.mxu0 0.0
    %1061 = vmatpush1.msra.mxu0 0.0
    %1062 = vmatprep.subr.mxu0 0.0
    %1063 = vmatpush1.msra.mxu0 0.0
    %1064 = vmatprep.subr.mxu0 0.0
    %1065 = vmatpush1.msra.mxu0 0.0
    %1066 = vmatprep.subr.mxu0 0.0
    %1067 = vmatpush1.msra.mxu0 0.0
    %1068 = vmatprep.mubr.f32.mxu0 0.0
    %1069 = vmatmul.mubr.f32.gmra.mrb[0].mxu0 %v999
    %v1070 = vpop.f32.mrb[0].mxu0
    %v1071 = vadd.f32 0.0, %v1070
    %v1072 = vpop.f32.mrb[0].mxu0
    %1073 = vmatprep.mubr.f32.mxu0 0.0
    %1074 = vmatmul.mubr.f32.gmra.mrb[0].mxu0 %v1002
    %v1075 = vpop.f32.mrb[0].mxu0
    %v1076 = vadd.f32 0.0, %v1075
    %v1077 = vpop.f32.mrb[0].mxu0
    %1078 = vdwg.mxu0
    %v1079 = vmul.f32 %v1071, %v996
    %v1080 = vmul.f32 %v1076, %v997
    %1083 = vrot.lane.b32.xlu0 %v681, 8
    %v1084 = vpop.permute.xlu0 %1083
    %1085 = vrot.lane.b32.xlu0 %v682, 8
    %v1086 = vpop.permute.xlu0 %1085
    %1091 = vrot.lane.b32.xlu0 %v887, 16
    %v1092 = vpop.permute.xlu0 %1091
    %1093 = vrot.lane.b32.xlu0 %v888, 16
    %v1094 = vpop.permute.xlu0 %1093
    %1099 = vrot.lane.b32.xlu0 %v1079, 24
    %v1100 = vpop.permute.xlu0 %1099
    %1101 = vrot.lane.b32.xlu0 %v1080, 24
    %v1102 = vpop.permute.xlu0 %1101
    %v1105 = vsel %vm291, %v489, %v1084
    %v1106 = vsel %vm291, %v490, %v1086
    %v1107 = vsel %vm375, %v1105, %v1092
    %v1108 = vsel %vm375, %v1106, %v1094
    %vm1109 = vcmask 195584
    %v1110 = vsel %vm1109, %v1107, %v1100
    %v1111 = vsel %vm1109, %v1108, %v1102
    %v1112 = vld [vmem:[%s8] sm:$0xff]
    %v1113 = vld [vmem:[%s8 + $0x8] sm:$0xff]
    %v1114 = vld [vmem:[%s8 + $0x10] sm:$0xff]
    %v1115 = vld [vmem:[%s8 + $0x18] sm:$0xff]
    %v1116 = vld [vmem:[%s9] sm:$0x1]
    %v1118 = vlaneseq
    %v1119 = vshrl.u32 %v1118, 7
    %v1120 = vsub.s32 0, %v1119
    %v1121 = vrot.slane %v1116, %v1120
    %v1124 = vsel %vm53, %v1110, 0
    %v1127 = vsel %vm53, %v1111, 0
    %v1130 = vsel %vm53, %v1112, 0
    %v1133 = vsel %vm53, %v1113, 0
    %v1136 = vsel %vm53, %v1114, 0
    %v1139 = vsel %vm53, %v1115, 0
    %1141 = vmatprep.subr.mxu0 0.0
    %1142 = vmatpush1.xpose.msra.mxu0 %v1130
    %1143 = vmatprep.subr.mxu0 0.0
    %1144 = vmatpush1.xpose.msra.mxu0 %v1133
    %1145 = vmatprep.subr.mxu0 0.0
    %1146 = vmatpush1.xpose.msra.mxu0 %v1136
    %1147 = vmatprep.subr.mxu0 0.0
    %1148 = vmatpush1.xpose.msra.mxu0 %v1139
    %1149 = vmatprep.subr.mxu0 0.0
    %1150 = vmatpush1.xpose.msra.mxu0 0.0
    %1151 = vmatprep.subr.mxu0 0.0
    %1152 = vmatpush1.xpose.msra.mxu0 0.0
    %1153 = vmatprep.subr.mxu0 0.0
    %1154 = vmatpush1.xpose.msra.mxu0 0.0
    %1155 = vmatprep.subr.mxu0 0.0
    %1156 = vmatpush1.xpose.msra.mxu0 0.0
    %1157 = vmatprep.subr.mxu0 0.0
    %1158 = vmatpush1.xpose.msra.mxu0 0.0
    %1159 = vmatprep.subr.mxu0 0.0
    %1160 = vmatpush1.xpose.msra.mxu0 0.0
    %1161 = vmatprep.subr.mxu0 0.0
    %1162 = vmatpush1.xpose.msra.mxu0 0.0
    %1163 = vmatprep.subr.mxu0 0.0
    %1164 = vmatpush1.xpose.msra.mxu0 0.0
    %1165 = vmatprep.subr.mxu0 0.0
    %1166 = vmatpush1.xpose.msra.mxu0 0.0
    %1167 = vmatprep.subr.mxu0 0.0
    %1168 = vmatpush1.xpose.msra.mxu0 0.0
    %1169 = vmatprep.subr.mxu0 0.0
    %1170 = vmatpush1.xpose.msra.mxu0 0.0
    %1171 = vmatprep.subr.mxu0 0.0
    %1172 = vmatpush1.xpose.msra.mxu0 0.0
    %1173 = vmatprep.subr.mxu0 0.0
    %1174 = vmatpush1.xpose.msra.mxu0 0.0
    %1175 = vmatprep.subr.mxu0 0.0
    %1176 = vmatpush1.xpose.msra.mxu0 0.0
    %1177 = vmatprep.subr.mxu0 0.0
    %1178 = vmatpush1.xpose.msra.mxu0 0.0
    %1179 = vmatprep.subr.mxu0 0.0
    %1180 = vmatpush1.xpose.msra.mxu0 0.0
    %1181 = vmatprep.subr.mxu0 0.0
    %1182 = vmatpush1.xpose.msra.mxu0 0.0
    %1183 = vmatprep.subr.mxu0 0.0
    %1184 = vmatpush1.xpose.msra.mxu0 0.0
    %1185 = vmatprep.subr.mxu0 0.0
    %1186 = vmatpush1.xpose.msra.mxu0 0.0
    %1187 = vmatprep.subr.mxu0 0.0
    %1188 = vmatpush1.xpose.msra.mxu0 0.0
    %1189 = vmatprep.subr.mxu0 0.0
    %1190 = vmatpush1.xpose.msra.mxu0 0.0
    %1191 = vmatprep.subr.mxu0 0.0
    %1192 = vmatpush1.xpose.msra.mxu0 0.0
    %1193 = vmatprep.subr.mxu0 0.0
    %1194 = vmatpush1.xpose.msra.mxu0 0.0
    %1195 = vmatprep.subr.mxu0 0.0
    %1196 = vmatpush1.xpose.msra.mxu0 0.0
    %1197 = vmatprep.subr.mxu0 0.0
    %1198 = vmatpush1.xpose.msra.mxu0 0.0
    %1199 = vmatprep.subr.mxu0 0.0
    %1200 = vmatpush1.xpose.msra.mxu0 0.0
    %1201 = vmatprep.subr.mxu0 0.0
    %1202 = vmatpush1.xpose.msra.mxu0 0.0
    %1203 = vmatprep.subr.mxu0 0.0
    %1204 = vmatpush1.xpose.msra.mxu0 0.0
    %1205 = vmatprep.mubr.f32.mxu0 0.0
    %1206 = vmatmul.mubr.f32.gmra.mrb[0].mxu0 %v1124
    %v1207 = vpop.f32.mrb[0].mxu0
    %v1208 = vadd.f32 %v1121, %v1207
    %v1209 = vpop.f32.mrb[0].mxu0
    %1210 = vmatprep.mubr.f32.mxu0 0.0
    %1211 = vmatmul.mubr.f32.gmra.mrb[0].mxu0 %v1127
    %v1212 = vpop.f32.mrb[0].mxu0
    %v1213 = vadd.f32 %v1121, %v1212
    %v1214 = vpop.f32.mrb[0].mxu0
    %1215 = vdwg.mxu0
    %1216 = vst.msk [vmem:[#allocation2] sm:$0xff] %vm53, %v1208
    %1217 = vst.msk [vmem:[#allocation2 + $0x8] sm:$0xff] %vm53, %v1213
    // Predicated region
    $region42: #{tpu_custom_call.1} parent=1 // pred_check
      _
    $region43: #{tpu_custom_call.1} parent=1 // pred_check_branch
      %1219 = sbr.rel (0) target = $region45
    $region44: #{tpu_custom_call.1} parent=1 // pred_region
      %s1221 = ssub.s32 256, 256
      %1222 = vsyncadd [#allocation3], %s1221
      %s1223 = sshll.u32 [#allocation2], 4
      %s1224 = int_to_ptr.vmem [resolvable:$true] %s1223
      %1229 = dma.vmem_to_hbm [thread:$0]  %s1224, 256, %s10, [#allocation3], 128, 128, 8
    $region45: #{tpu_custom_call.1} parent=1 // pred_fallthru
      _
    // Predicated region
    $region46: #{tpu_custom_call.1} parent=1 // pred_check
      _
    $region47: #{tpu_custom_call.1} parent=1 // pred_check_branch
      %1231 = sbr.rel (0) target = $region49
    $region48: #{tpu_custom_call.1} parent=1 // pred_region
      %1232 = dma.done [#allocation3], 256
    $region49: #{tpu_custom_call.1} parent=1 // pred_fallthru
      _
    %1233 = vsyncpa [#allocation3], 1

</llo_original>
